<compile_context>
chip_gen: v6e
topology: v6e:2x2x1
jax: 0.10.0
libtpu: 0.0.40
codegen_flags: <defaults>
</compile_context>

<pallas_src>
import functools

import numpy as np
import jax
import jax.numpy as jnp
from jax import lax
from jax.experimental import pallas as pl
from jax.experimental.pallas import tpu as pltpu

D_MODEL = 64
N_HEADS = 4
D_HEAD = D_MODEL // N_HEADS
RMS_EPS = 1e-6
ROPE_BASE = 10000.0


# ----------------------------------------------------------------------------
# host-side precomputed constants
# ----------------------------------------------------------------------------
def _rope_tables(n, d_head):
    inv_freq = 1.0 / (ROPE_BASE ** (jnp.arange(0, d_head, 2, dtype=jnp.float32) / d_head))
    pos = jnp.arange(n, dtype=jnp.float32)
    ang = pos[:, None] * inv_freq[None, :]            # (N, d_head/2)
    emb = jnp.concatenate([ang, ang], axis=-1)        # (N, d_head)
    return jnp.cos(emb), jnp.sin(emb)


def _head_avg_matrix(n_groups, d_head):
    """(G*d, G*d) block-diagonal M so that (x*x) @ M == per-group mean of squares."""
    blk = np.full((d_head, d_head), 1.0 / d_head, np.float32)
    return jnp.asarray(np.kron(np.eye(n_groups, dtype=np.float32), blk))


def _head_rotate_half_matrix(n_groups, d_head):
    """(G*d, G*d) signed permutation R so that x @ R == rotate_half(x) per group."""
    half = d_head // 2
    r = np.zeros((d_head, d_head), np.float32)
    for c in range(half):
        r[half + c, c] = -1.0        # out[:, c]        = -x[:, half + c]
        r[c, half + c] = 1.0         # out[:, half + c] =  x[:, c]
    return jnp.asarray(np.kron(np.eye(n_groups, dtype=np.float32), r))


def _pick_batch_block(b, max_bt=8):
    """Largest divisor of b that is <= max_bt, preferring >= 2 grid steps
    (keeps both v7x TensorCores busy; extra steps are ~0.35us each)."""
    divs = [d for d in range(1, min(b, max_bt) + 1) if b % d == 0]
    two_step = [d for d in divs if b // d >= 2]
    return max(two_step) if two_step else max(divs)


# ----------------------------------------------------------------------------
# kernel
# ----------------------------------------------------------------------------
def attn_kernel(x_ref, wqkv_ref, wo_ref, bo_ref, qknw_ref, cos_ref, sin_ref,
                avg_ref, rot_ref, o_ref, merged_ref, *,
                bt, n, n_heads, d_head, compute_dtype):
    """One block of `bt` batch elements per grid step."""
    d = n_heads * d_head                      # 64
    rows = bt * n                             # tokens per grid step
    _c = lambda t: t.astype(compute_dtype)    # MXU operand cast (no-op for f32)

    # (Bt, N, D) -> (Bt*N, D): leading-dim merge, layout-free since N % 8 == 0.
    x = x_ref[...].reshape(rows, d)

    # Fused q|k|v projection: one (rows,64)x(64,192) MXU dot, pre-transposed W.
    qkv = jnp.dot(_c(x), wqkv_ref[...], preferred_element_type=jnp.float32)
    qk = qkv[:, :2 * d]      # (rows, 128) = [q heads | k heads]  (vreg-aligned)
    v = qkv[:, 2 * d:]       # (rows, 64)

    # Per-head RMSNorm on the fused 128-lane q|k slab:
    #   mean_h(x^2) via one block-diagonal (128,128) dot, rsqrt on the EUP.
    #   SDPA scale d_head**-0.5 is folded into the q half of qknw host-side.
    ms = jnp.dot(_c(qk * qk), avg_ref[...], preferred_element_type=jnp.float32)
    qk = qk * lax.rsqrt(ms + RMS_EPS) * qknw_ref[...]

    # Rotate-half RoPE on the fused slab: x*cos + (x @ R)*sin, one (128,128) dot.
    qk = (qk * cos_ref[...]
          + jnp.dot(_c(qk), rot_ref[...], preferred_element_type=jnp.float32)
          * sin_ref[...])

    # Head split to a single (n_heads*bt, n, d_head) batch axis so the whole
    # attention is 2 batched MXU dots + 1 batched softmax (not 2*H*Bt tiny dots).
    def split_heads(slab, base):
        parts = [slab[:, base + h * d_head: base + (h + 1) * d_head]
                 for h in range(n_heads)]
        hz = jnp.stack(parts, axis=0)                  # (H, rows, d_head)
        return hz.reshape(n_heads * bt, n, d_head)     # z = h*bt + b

    qz = split_heads(qk, 0)
    kz = split_heads(qk, d)
    vz = split_heads(v, 0)

    s = jnp.einsum('znd,zmd->znm', _c(qz), _c(kz),
                   preferred_element_type=jnp.float32)        # (Z, n, n)
    s = s - jnp.max(s, axis=-1, keepdims=True)
    p = jnp.exp(s)
    p = p / jnp.sum(p, axis=-1, keepdims=True)                # exact divide
    oz = jnp.einsum('znm,zmd->znd', _c(p), _c(vz),
                    preferred_element_type=jnp.float32)       # (Z, n, d_head)

    # head_merge 'b h n d -> b n (h d)': write each head into its lane offsets
    # of a VMEM scratch slab (no concatenate lane-shift chain).
    oh = oz.reshape(n_heads, rows, d_head)
    for h in range(n_heads):
        merged_ref[:, h * d_head:(h + 1) * d_head] = oh[h]
    attn_out = merged_ref[...]

    out = jnp.dot(_c(attn_out), wo_ref[...],
                  preferred_element_type=jnp.float32) + bo_ref[...]
    o_ref[...] = out.reshape(bt, n, d).astype(o_ref.dtype)


# ----------------------------------------------------------------------------
# wrapper
# ----------------------------------------------------------------------------
def attn_forward(x, wqkv, wout, bout, qn_w, kn_w, *, compute_dtype=jnp.float32):
    """Forward pass of Attn (flash=False, cross=False, normalized=False).

    compute_dtype: dtype of the MXU matmul operands. float32 by default (tight
    numerics); set jnp.bfloat16 on v6e/v7x for 2x MXU throughput and half the
    weight bytes (loosen tolerances accordingly).
    """
    B, N, D = x.shape
    assert D == D_MODEL and D == N_HEADS * D_HEAD
    assert N % 8 == 0, "sequence length must be a multiple of the sublane tile (8)"

    Bt = _pick_batch_block(B)
    rows = Bt * N

    # ---- host-side precompute (constant across the grid)
    cos, sin = _rope_tables(N, D_HEAD)                    # (N, d_head)
    cos_f = jnp.tile(cos, (Bt, 2 * N_HEADS))              # (Bt*N, 128): q|k head tiled
    sin_f = jnp.tile(sin, (Bt, 2 * N_HEADS))

    # fused, pre-transposed qkv weight: columns = [q heads | k heads | v heads]
    wqkv_t = wqkv.T.astype(compute_dtype)                 # (64, 192)
    wo_t = wout.T.astype(compute_dtype)                   # (64, 64)
    bo = bout.reshape(1, D).astype(jnp.float32)

    # fused q|k RMSNorm weights, SDPA softmax scale folded into the q half
    scale = D_HEAD ** -0.5
    qknw = jnp.concatenate([
        jnp.tile(qn_w.astype(jnp.float32) * scale, (N_HEADS,)),
        jnp.tile(kn_w.astype(jnp.float32), (N_HEADS,)),
    ]).reshape(1, 2 * D)                                   # (1, 128)

    avg = _head_avg_matrix(2 * N_HEADS, D_HEAD).astype(compute_dtype)          # (128,128)
    rot = _head_rotate_half_matrix(2 * N_HEADS, D_HEAD).astype(compute_dtype)  # (128,128)

    kernel = functools.partial(attn_kernel, bt=Bt, n=N, n_heads=N_HEADS,
                               d_head=D_HEAD, compute_dtype=compute_dtype)

    def const(shape):
        return pl.BlockSpec(shape, lambda b: (0,) * len(shape))

    return pl.pallas_call(
        kernel,
        out_shape=jax.ShapeDtypeStruct((B, N, D), x.dtype),
        grid_spec=pltpu.PrefetchScalarGridSpec(
            num_scalar_prefetch=0,
            grid=(B // Bt,),
            in_specs=[
                pl.BlockSpec((Bt, N, D), lambda b: (b, 0, 0)),   # x
                const((D, 3 * D)),       # fused qkv weight (pre-transposed)
                const((D, D)),           # output weight (pre-transposed)
                const((1, D)),           # output bias
                const((1, 2 * D)),       # fused q|k norm weights (scale folded)
                const((rows, 2 * D)),    # rope cos (batch+head tiled)
                const((rows, 2 * D)),    # rope sin (batch+head tiled)
                const((2 * D, 2 * D)),   # block-diagonal per-head averaging
                const((2 * D, 2 * D)),   # signed rotate-half permutation
            ],
            out_specs=pl.BlockSpec((Bt, N, D), lambda b: (b, 0, 0)),
            scratch_shapes=[pltpu.VMEM((rows, D), jnp.float32)],   # merged heads
        ),
        compiler_params=pltpu.CompilerParams(
            dimension_semantics=("parallel",)),
    )(x, wqkv_t, wo_t, bo, qknw, cos_f, sin_f, avg, rot)


# ----------------------------------------------------------------------------
# pure-JAX reference (mirrors the PyTorch forward, flash=False branch)
# ----------------------------------------------------------------------------
def _rotate_half(x):
    half = x.shape[-1] // 2
    return jnp.concatenate([-x[..., half:], x[..., :half]], axis=-1)


def attn_reference(x, wqkv, wout, bout, qn_w, kn_w):
    B, N, D = x.shape
    qkv = jnp.einsum('bnd,ed->bne', x, wqkv)                  # (B, N, 3D)
    q, k, v = jnp.split(qkv, 3, axis=-1)

    def split_heads(t):                                       # 'b n (h d) -> b h n d'
        return t.reshape(B, N, N_HEADS, D_HEAD).transpose(0, 2, 1, 3)

    q, k, v = map(split_heads, (q, k, v))

    def rms(t, w):
        return t * lax.rsqrt(jnp.mean(t * t, axis=-1, keepdims=True) + RMS_EPS) * w

    q = rms(q, qn_w)
    k = rms(k, kn_w)

    cos, sin = _rope_tables(N, D_HEAD)
    q = q * cos + _rotate_half(q) * sin
    k = k * cos + _rotate_half(k) * sin

    s = jnp.einsum('bhqd,bhkd->bhqk', q, k) * (D_HEAD ** -0.5)
    p = jax.nn.softmax(s, axis=-1)
    o = jnp.einsum('bhqk,bhkd->bhqd', p, v)
    o = o.transpose(0, 2, 1, 3).reshape(B, N, D)              # 'b h n d -> b n (h d)'
    return jnp.einsum('bnd,ed->bne', o, wout) + bout


if __name__ == "__main__":
    key = jax.random.PRNGKey(0)
    kx, kqkv, kwo, kbo = jax.random.split(key, 4)

    B, N = 2, 16
    x = jax.random.normal(kx, (B, N, D_MODEL), jnp.float32)

    # Deterministic synthetic parameters (module __init__ shapes).
    wqkv = jax.random.normal(kqkv, (3 * D_MODEL, D_MODEL), jnp.float32) * (D_MODEL ** -0.5)
    wout = jax.random.normal(kwo, (D_MODEL, D_MODEL), jnp.float32) * (D_MODEL ** -0.5)
    bout = jax.random.normal(kbo, (D_MODEL,), jnp.float32) * 0.01
    qn_w = jnp.ones((D_HEAD,), jnp.float32)   # RMSNorm weights init to 1
    kn_w = jnp.ones((D_HEAD,), jnp.float32)

    ref = attn_reference(x, wqkv, wout, bout, qn_w, kn_w)

    # f32 compute path: tight tolerance (exact softmax divide, f32 MXU accum).
    out = attn_forward(x, wqkv, wout, bout, qn_w, kn_w)
    out = jax.block_until_ready(out)
    assert out.shape == (B, N, D_MODEL)
    assert jnp.allclose(out, ref, atol=2e-3, rtol=2e-3), (
        "Pallas kernel (f32) mismatch vs reference, max err "
        f"{float(jnp.max(jnp.abs(out - ref)))}")

    # bf16 MXU-operand path (recommended on v6e/v7x): loose sanity tolerance.
    out_bf16 = attn_forward(x, wqkv, wout, bout, qn_w, kn_w,
                            compute_dtype=jnp.bfloat16)
    out_bf16 = jax.block_until_ready(out_bf16)
    assert jnp.allclose(out_bf16, ref, atol=0.15, rtol=0.1), (
        "Pallas kernel (bf16) mismatch vs reference, max err "
        f"{float(jnp.max(jnp.abs(out_bf16 - ref)))}")

    print("KERNEL_OK")
</pallas_src>

<mosaic_0001>
module attributes {stable_mosaic.version = 11 : i64} {
  func.func @attn_kernel(%arg0: i32, %arg1: memref<1x16x64xf32, #tpu.memory_space<vmem>>, %arg2: memref<64x192xf32, #tpu.memory_space<vmem>>, %arg3: memref<64x64xf32, #tpu.memory_space<vmem>>, %arg4: memref<1x64xf32, #tpu.memory_space<vmem>>, %arg5: memref<1x128xf32, #tpu.memory_space<vmem>>, %arg6: memref<16x128xf32, #tpu.memory_space<vmem>>, %arg7: memref<16x128xf32, #tpu.memory_space<vmem>>, %arg8: memref<128x128xf32, #tpu.memory_space<vmem>>, %arg9: memref<128x128xf32, #tpu.memory_space<vmem>>, %arg10: memref<1x16x64xf32, #tpu.memory_space<vmem>>, %arg11: memref<16x64xf32, #tpu.memory_space<vmem>>) attributes {dimension_semantics = [#tpu.dimension_semantics<parallel>], iteration_bounds = array<i64: 2>, scalar_prefetch = 0 : i64, scratch_operands = 1 : i64, tpu.core_type = #tpu.core_type<tc>, window_params = [{transform_indices = @transform_0, window_bounds = array<i64: 1, 16, 64>}, {pipeline_mode = #tpu.pipeline_mode<synchronous>, transform_indices = @transform_1, window_bounds = array<i64: 64, 192>}, {pipeline_mode = #tpu.pipeline_mode<synchronous>, transform_indices = @transform_2, window_bounds = array<i64: 64, 64>}, {pipeline_mode = #tpu.pipeline_mode<synchronous>, transform_indices = @transform_3, window_bounds = array<i64: 1, 64>}, {pipeline_mode = #tpu.pipeline_mode<synchronous>, transform_indices = @transform_4, window_bounds = array<i64: 1, 128>}, {pipeline_mode = #tpu.pipeline_mode<synchronous>, transform_indices = @transform_5, window_bounds = array<i64: 16, 128>}, {pipeline_mode = #tpu.pipeline_mode<synchronous>, transform_indices = @transform_6, window_bounds = array<i64: 16, 128>}, {pipeline_mode = #tpu.pipeline_mode<synchronous>, transform_indices = @transform_7, window_bounds = array<i64: 128, 128>}, {pipeline_mode = #tpu.pipeline_mode<synchronous>, transform_indices = @transform_8, window_bounds = array<i64: 128, 128>}, {transform_indices = @transform_9, window_bounds = array<i64: 1, 16, 64>}]} {
    %c0 = arith.constant 0 : index
    %c0_0 = arith.constant 0 : index
    %c0_1 = arith.constant 0 : index
    %0 = vector.load %arg1[%c0, %c0_0, %c0_1] : memref<1x16x64xf32, #tpu.memory_space<vmem>>, vector<1x16x64xf32>
    %1 = vector.shape_cast %0 : vector<1x16x64xf32> to vector<16x64xf32>
    %c0_2 = arith.constant 0 : index
    %c0_3 = arith.constant 0 : index
    %2 = vector.load %arg2[%c0_2, %c0_3] : memref<64x192xf32, #tpu.memory_space<vmem>>, vector<64x192xf32>
    %cst = arith.constant dense<0.000000e+00> : vector<16x192xf32>
    %3 = tpu.matmul %1, %2, %cst {dimension_numbers = #tpu.dot_dimension_numbers<[1], [0], [0], [1], [0, 0, 1, 1], [], []>} : vector<16x64xf32>, vector<64x192xf32>, vector<16x192xf32> -> vector<16x192xf32>
    %4 = vector.extract_strided_slice %3 {offsets = [0, 0], sizes = [16, 128], strides = [1, 1]} : vector<16x192xf32> to vector<16x128xf32>
    %5 = vector.extract_strided_slice %3 {offsets = [0, 128], sizes = [16, 64], strides = [1, 1]} : vector<16x192xf32> to vector<16x64xf32>
    %6 = arith.mulf %4, %4 : vector<16x128xf32>
    %c0_4 = arith.constant 0 : index
    %c0_5 = arith.constant 0 : index
    %7 = vector.load %arg8[%c0_4, %c0_5] : memref<128x128xf32, #tpu.memory_space<vmem>>, vector<128x128xf32>
    %cst_6 = arith.constant dense<0.000000e+00> : vector<16x128xf32>
    %8 = tpu.matmul %6, %7, %cst_6 {dimension_numbers = #tpu.dot_dimension_numbers<[1], [0], [0], [1], [0, 0, 1, 1], [], []>} : vector<16x128xf32>, vector<128x128xf32>, vector<16x128xf32> -> vector<16x128xf32>
    %cst_7 = arith.constant 9.99999997E-7 : f32
    %9 = vector.broadcast %cst_7 : f32 to vector<16x128xf32>
    %10 = arith.addf %8, %9 : vector<16x128xf32>
    %11 = math.rsqrt %10 : vector<16x128xf32>
    %12 = arith.mulf %4, %11 : vector<16x128xf32>
    %c0_8 = arith.constant 0 : index
    %c0_9 = arith.constant 0 : index
    %13 = vector.load %arg5[%c0_8, %c0_9] : memref<1x128xf32, #tpu.memory_space<vmem>>, vector<1x128xf32>
    %14 = vector.broadcast %13 : vector<1x128xf32> to vector<16x128xf32>
    %15 = arith.mulf %12, %14 : vector<16x128xf32>
    %c0_10 = arith.constant 0 : index
    %c0_11 = arith.constant 0 : index
    %16 = vector.load %arg6[%c0_10, %c0_11] : memref<16x128xf32, #tpu.memory_space<vmem>>, vector<16x128xf32>
    %17 = arith.mulf %15, %16 : vector<16x128xf32>
    %c0_12 = arith.constant 0 : index
    %c0_13 = arith.constant 0 : index
    %18 = vector.load %arg9[%c0_12, %c0_13] : memref<128x128xf32, #tpu.memory_space<vmem>>, vector<128x128xf32>
    %cst_14 = arith.constant dense<0.000000e+00> : vector<16x128xf32>
    %19 = tpu.matmul %15, %18, %cst_14 {dimension_numbers = #tpu.dot_dimension_numbers<[1], [0], [0], [1], [0, 0, 1, 1], [], []>} : vector<16x128xf32>, vector<128x128xf32>, vector<16x128xf32> -> vector<16x128xf32>
    %c0_15 = arith.constant 0 : index
    %c0_16 = arith.constant 0 : index
    %20 = vector.load %arg7[%c0_15, %c0_16] : memref<16x128xf32, #tpu.memory_space<vmem>>, vector<16x128xf32>
    %21 = arith.mulf %19, %20 : vector<16x128xf32>
    %22 = arith.addf %17, %21 : vector<16x128xf32>
    %23 = vector.extract_strided_slice %22 {offsets = [0, 0], sizes = [16, 16], strides = [1, 1]} : vector<16x128xf32> to vector<16x16xf32>
    %24 = vector.extract_strided_slice %22 {offsets = [0, 16], sizes = [16, 16], strides = [1, 1]} : vector<16x128xf32> to vector<16x16xf32>
    %25 = vector.extract_strided_slice %22 {offsets = [0, 32], sizes = [16, 16], strides = [1, 1]} : vector<16x128xf32> to vector<16x16xf32>
    %26 = vector.extract_strided_slice %22 {offsets = [0, 48], sizes = [16, 16], strides = [1, 1]} : vector<16x128xf32> to vector<16x16xf32>
    %27 = vector.shape_cast %23 : vector<16x16xf32> to vector<1x16x16xf32>
    %28 = vector.shape_cast %24 : vector<16x16xf32> to vector<1x16x16xf32>
    %29 = vector.shape_cast %25 : vector<16x16xf32> to vector<1x16x16xf32>
    %30 = vector.shape_cast %26 : vector<16x16xf32> to vector<1x16x16xf32>
    %31 = tpu.concatenate %27, %28, %29, %30 in 0 : vector<1x16x16xf32>, vector<1x16x16xf32>, vector<1x16x16xf32>, vector<1x16x16xf32> -> vector<4x16x16xf32>
    %32 = vector.extract_strided_slice %22 {offsets = [0, 64], sizes = [16, 16], strides = [1, 1]} : vector<16x128xf32> to vector<16x16xf32>
    %33 = vector.extract_strided_slice %22 {offsets = [0, 80], sizes = [16, 16], strides = [1, 1]} : vector<16x128xf32> to vector<16x16xf32>
    %34 = vector.extract_strided_slice %22 {offsets = [0, 96], sizes = [16, 16], strides = [1, 1]} : vector<16x128xf32> to vector<16x16xf32>
    %35 = vector.extract_strided_slice %22 {offsets = [0, 112], sizes = [16, 16], strides = [1, 1]} : vector<16x128xf32> to vector<16x16xf32>
    %36 = vector.shape_cast %32 : vector<16x16xf32> to vector<1x16x16xf32>
    %37 = vector.shape_cast %33 : vector<16x16xf32> to vector<1x16x16xf32>
    %38 = vector.shape_cast %34 : vector<16x16xf32> to vector<1x16x16xf32>
    %39 = vector.shape_cast %35 : vector<16x16xf32> to vector<1x16x16xf32>
    %40 = tpu.concatenate %36, %37, %38, %39 in 0 : vector<1x16x16xf32>, vector<1x16x16xf32>, vector<1x16x16xf32>, vector<1x16x16xf32> -> vector<4x16x16xf32>
    %41 = vector.extract_strided_slice %5 {offsets = [0, 0], sizes = [16, 16], strides = [1, 1]} : vector<16x64xf32> to vector<16x16xf32>
    %42 = vector.extract_strided_slice %5 {offsets = [0, 16], sizes = [16, 16], strides = [1, 1]} : vector<16x64xf32> to vector<16x16xf32>
    %43 = vector.extract_strided_slice %5 {offsets = [0, 32], sizes = [16, 16], strides = [1, 1]} : vector<16x64xf32> to vector<16x16xf32>
    %44 = vector.extract_strided_slice %5 {offsets = [0, 48], sizes = [16, 16], strides = [1, 1]} : vector<16x64xf32> to vector<16x16xf32>
    %45 = vector.shape_cast %41 : vector<16x16xf32> to vector<1x16x16xf32>
    %46 = vector.shape_cast %42 : vector<16x16xf32> to vector<1x16x16xf32>
    %47 = vector.shape_cast %43 : vector<16x16xf32> to vector<1x16x16xf32>
    %48 = vector.shape_cast %44 : vector<16x16xf32> to vector<1x16x16xf32>
    %49 = tpu.concatenate %45, %46, %47, %48 in 0 : vector<1x16x16xf32>, vector<1x16x16xf32>, vector<1x16x16xf32>, vector<1x16x16xf32> -> vector<4x16x16xf32>
    "tpu.trace_start"() <{level = 10 : i32, message = "znd,zmd->znm"}> : () -> ()
    %cst_17 = arith.constant dense<0.000000e+00> : vector<4x16x16xf32>
    %50 = tpu.matmul %31, %40, %cst_17 {dimension_numbers = #tpu.dot_dimension_numbers<[2], [2], [1], [1], [0, 0, 0, 1, 1, 1], [0], [0]>} : vector<4x16x16xf32>, vector<4x16x16xf32>, vector<4x16x16xf32> -> vector<4x16x16xf32>
    "tpu.trace_stop"() : () -> ()
    %cst_18 = arith.constant dense<0xFF800000> : vector<4x16xf32>
    %51 = vector.multi_reduction <maximumf>, %50, %cst_18 [2] : vector<4x16x16xf32> to vector<4x16xf32>
    %52 = vector.shape_cast %51 : vector<4x16xf32> to vector<4x16x1xf32>
    %53 = vector.broadcast %52 : vector<4x16x1xf32> to vector<4x16x16xf32>
    %54 = arith.subf %50, %53 : vector<4x16x16xf32>
    %55 = math.exp %54 : vector<4x16x16xf32>
    %cst_19 = arith.constant dense<0.000000e+00> : vector<4x16xf32>
    %56 = vector.multi_reduction <add>, %55, %cst_19 [2] : vector<4x16x16xf32> to vector<4x16xf32>
    %57 = vector.shape_cast %56 : vector<4x16xf32> to vector<4x16x1xf32>
    %58 = vector.broadcast %57 : vector<4x16x1xf32> to vector<4x16x16xf32>
    %59 = arith.divf %55, %58 : vector<4x16x16xf32>
    "tpu.trace_start"() <{level = 10 : i32, message = "znm,zmd->znd"}> : () -> ()
    %cst_20 = arith.constant dense<0.000000e+00> : vector<4x16x16xf32>
    %60 = tpu.matmul %59, %49, %cst_20 {dimension_numbers = #tpu.dot_dimension_numbers<[2], [1], [1], [2], [0, 0, 0, 1, 1, 2], [0], [0]>} : vector<4x16x16xf32>, vector<4x16x16xf32>, vector<4x16x16xf32> -> vector<4x16x16xf32>
    "tpu.trace_stop"() : () -> ()
    %61 = vector.extract_strided_slice %60 {offsets = [0, 0, 0], sizes = [1, 16, 16], strides = [1, 1, 1]} : vector<4x16x16xf32> to vector<1x16x16xf32>
    %62 = vector.shape_cast %61 : vector<1x16x16xf32> to vector<16x16xf32>
    %c0_21 = arith.constant 0 : index
    %c0_22 = arith.constant 0 : index
    %63 = vector.load %arg11[%c0_21, %c0_22] : memref<16x64xf32, #tpu.memory_space<vmem>>, vector<16x16xf32>
    tpu.vector_store %arg11[%c0_21, %c0_22], %62 {strides = array<i32>} : memref<16x64xf32, #tpu.memory_space<vmem>>, vector<16x16xf32>,
    %64 = vector.extract_strided_slice %60 {offsets = [1, 0, 0], sizes = [1, 16, 16], strides = [1, 1, 1]} : vector<4x16x16xf32> to vector<1x16x16xf32>
    %65 = vector.shape_cast %64 : vector<1x16x16xf32> to vector<16x16xf32>
    %c0_23 = arith.constant 0 : index
    %c16 = arith.constant 16 : index
    %66 = vector.load %arg11[%c0_23, %c16] : memref<16x64xf32, #tpu.memory_space<vmem>>, vector<16x16xf32>
    tpu.vector_store %arg11[%c0_23, %c16], %65 {strides = array<i32>} : memref<16x64xf32, #tpu.memory_space<vmem>>, vector<16x16xf32>,
    %67 = vector.extract_strided_slice %60 {offsets = [2, 0, 0], sizes = [1, 16, 16], strides = [1, 1, 1]} : vector<4x16x16xf32> to vector<1x16x16xf32>
    %68 = vector.shape_cast %67 : vector<1x16x16xf32> to vector<16x16xf32>
    %c0_24 = arith.constant 0 : index
    %c32 = arith.constant 32 : index
    %69 = vector.load %arg11[%c0_24, %c32] : memref<16x64xf32, #tpu.memory_space<vmem>>, vector<16x16xf32>
    tpu.vector_store %arg11[%c0_24, %c32], %68 {strides = array<i32>} : memref<16x64xf32, #tpu.memory_space<vmem>>, vector<16x16xf32>,
    %70 = vector.extract_strided_slice %60 {offsets = [3, 0, 0], sizes = [1, 16, 16], strides = [1, 1, 1]} : vector<4x16x16xf32> to vector<1x16x16xf32>
    %71 = vector.shape_cast %70 : vector<1x16x16xf32> to vector<16x16xf32>
    %c0_25 = arith.constant 0 : index
    %c48 = arith.constant 48 : index
    %72 = vector.load %arg11[%c0_25, %c48] : memref<16x64xf32, #tpu.memory_space<vmem>>, vector<16x16xf32>
    tpu.vector_store %arg11[%c0_25, %c48], %71 {strides = array<i32>} : memref<16x64xf32, #tpu.memory_space<vmem>>, vector<16x16xf32>,
    %c0_26 = arith.constant 0 : index
    %c0_27 = arith.constant 0 : index
    %73 = vector.load %arg11[%c0_26, %c0_27] : memref<16x64xf32, #tpu.memory_space<vmem>>, vector<16x64xf32>
    %c0_28 = arith.constant 0 : index
    %c0_29 = arith.constant 0 : index
    %74 = vector.load %arg3[%c0_28, %c0_29] : memref<64x64xf32, #tpu.memory_space<vmem>>, vector<64x64xf32>
    %cst_30 = arith.constant dense<0.000000e+00> : vector<16x64xf32>
    %75 = tpu.matmul %73, %74, %cst_30 {dimension_numbers = #tpu.dot_dimension_numbers<[1], [0], [0], [1], [0, 0, 1, 1], [], []>} : vector<16x64xf32>, vector<64x64xf32>, vector<16x64xf32> -> vector<16x64xf32>
    %c0_31 = arith.constant 0 : index
    %c0_32 = arith.constant 0 : index
    %76 = vector.load %arg4[%c0_31, %c0_32] : memref<1x64xf32, #tpu.memory_space<vmem>>, vector<1x64xf32>
    %77 = vector.broadcast %76 : vector<1x64xf32> to vector<16x64xf32>
    %78 = arith.addf %75, %77 : vector<16x64xf32>
    %79 = vector.shape_cast %78 : vector<16x64xf32> to vector<1x16x64xf32>
    %c0_33 = arith.constant 0 : index
    %c0_34 = arith.constant 0 : index
    %c0_35 = arith.constant 0 : index
    %80 = vector.load %arg10[%c0_33, %c0_34, %c0_35] : memref<1x16x64xf32, #tpu.memory_space<vmem>>, vector<1x16x64xf32>
    tpu.vector_store %arg10[%c0_33, %c0_34, %c0_35], %79 {strides = array<i32>} : memref<1x16x64xf32, #tpu.memory_space<vmem>>, vector<1x16x64xf32>,
    return
  }
  func.func @transform_0(%arg0: i32) -> (i32, i32, i32) {
    %c0_i32 = arith.constant 0 : i32
    %c0_i32_0 = arith.constant 0 : i32
    %c0_i32_1 = arith.constant 0 : i32
    return %arg0, %c0_i32, %c0_i32_0 : i32, i32, i32
  }
  func.func @transform_1(%arg0: i32) -> (i32, i32) {
    %c0_i32 = arith.constant 0 : i32
    %c0_i32_0 = arith.constant 0 : i32
    %c0_i32_1 = arith.constant 0 : i32
    return %c0_i32, %c0_i32_0 : i32, i32
  }
  func.func @transform_2(%arg0: i32) -> (i32, i32) {
    %c0_i32 = arith.constant 0 : i32
    %c0_i32_0 = arith.constant 0 : i32
    %c0_i32_1 = arith.constant 0 : i32
    return %c0_i32, %c0_i32_0 : i32, i32
  }
  func.func @transform_3(%arg0: i32) -> (i32, i32) {
    %c0_i32 = arith.constant 0 : i32
    %c0_i32_0 = arith.constant 0 : i32
    %c0_i32_1 = arith.constant 0 : i32
    return %c0_i32, %c0_i32_0 : i32, i32
  }
  func.func @transform_4(%arg0: i32) -> (i32, i32) {
    %c0_i32 = arith.constant 0 : i32
    %c0_i32_0 = arith.constant 0 : i32
    %c0_i32_1 = arith.constant 0 : i32
    return %c0_i32, %c0_i32_0 : i32, i32
  }
  func.func @transform_5(%arg0: i32) -> (i32, i32) {
    %c0_i32 = arith.constant 0 : i32
    %c0_i32_0 = arith.constant 0 : i32
    %c0_i32_1 = arith.constant 0 : i32
    return %c0_i32, %c0_i32_0 : i32, i32
  }
  func.func @transform_6(%arg0: i32) -> (i32, i32) {
    %c0_i32 = arith.constant 0 : i32
    %c0_i32_0 = arith.constant 0 : i32
    %c0_i32_1 = arith.constant 0 : i32
    return %c0_i32, %c0_i32_0 : i32, i32
  }
  func.func @transform_7(%arg0: i32) -> (i32, i32) {
    %c0_i32 = arith.constant 0 : i32
    %c0_i32_0 = arith.constant 0 : i32
    %c0_i32_1 = arith.constant 0 : i32
    return %c0_i32, %c0_i32_0 : i32, i32
  }
  func.func @transform_8(%arg0: i32) -> (i32, i32) {
    %c0_i32 = arith.constant 0 : i32
    %c0_i32_0 = arith.constant 0 : i32
    %c0_i32_1 = arith.constant 0 : i32
    return %c0_i32, %c0_i32_0 : i32, i32
  }
  func.func @transform_9(%arg0: i32) -> (i32, i32, i32) {
    %c0_i32 = arith.constant 0 : i32
    %c0_i32_0 = arith.constant 0 : i32
    %c0_i32_1 = arith.constant 0 : i32
    return %arg0, %c0_i32, %c0_i32_0 : i32, i32, i32
  }
}

</mosaic_0001>

<llo_original>
// kernel: tpu_custom_call.1
$region0: #{tpu_custom_call.1}
  #allocation0 [shape = 'u32[]', space=smem, size = 0x4, offset = 0x4, fixed_abs, tag = 'smem constant byte address 0x4 - core index']
  #allocation1 [shape = 'u32[144,128]{1,0:T(1,128)}', space=vmem, size = 0x12000, scoped, tag = 'internal scratch']
  #allocation2 [shape = 'f32[16,64]{1,0:T(8,128)}', space=vmem, size = 0x2000, scoped, tag = 'scratch operand']
  %s0 = inlined_call_operand.hbm [shape: f32[2,16,64], index: 0, kind: input, shape index: {}]
  %s1 = inlined_call_operand.hbm [shape: f32[64,192], index: 1, kind: input, shape index: {}]
  %s2 = inlined_call_operand.hbm [shape: f32[64,64], index: 2, kind: input, shape index: {}]
  %s3 = inlined_call_operand.vmem [shape: f32[1,64], index: 3, kind: input, shape index: {}]
  %s4 = inlined_call_operand.vmem [shape: f32[1,128], index: 4, kind: input, shape index: {}]
  %s5 = inlined_call_operand.hbm [shape: f32[16,128], index: 5, kind: input, shape index: {}]
  %s6 = inlined_call_operand.hbm [shape: f32[16,128], index: 6, kind: input, shape index: {}]
  %s7 = inlined_call_operand.hbm [shape: f32[128,128], index: 7, kind: input, shape index: {}]
  %s8 = inlined_call_operand.hbm [shape: f32[128,128], index: 8, kind: input, shape index: {}]
  %s9 = inlined_call_operand.hbm [shape: f32[2,16,64], index: 9, kind: output, shape index: {}]
  %s10 = sld [smem:[#allocation0]]
  $region97: #{tpu_custom_call.1} parent=0
    _
  %s12 = ssub.s32 1, %s10
  %s13 = scalar_select 0, %s12, %s10
  $region1: #{tpu_custom_call.1} parent=0
    #allocation3 [shape = 'u8[16384]{0}', space=vmem, size = 0x4000, scoped, tag = 'input window, operand 0']
    #allocation4 [shape = 's32[2]{0}', space=sflag, size = 0x8, scoped, tag = 'scoped memory for tpu_custom_call.1']
    #allocation5 [shape = 's32[2]{0}', space=sflag, size = 0x8, scoped, tag = 'scoped memory for tpu_custom_call.1']
    #allocation6 [shape = 'u8[65536]{0}', space=vmem, size = 0x10000, scoped, tag = 'input window, operand 1, single buffered']
    #allocation7 [shape = 's32[1]{0}', space=sflag, size = 0x4, scoped, tag = 'scoped memory for tpu_custom_call.1']
    #allocation8 [shape = 'u8[32768]{0}', space=vmem, size = 0x8000, scoped, tag = 'input window, operand 2, single buffered']
    #allocation9 [shape = 'u8[8192]{0}', space=vmem, size = 0x2000, scoped, tag = 'input window, operand 5, single buffered']
    #allocation10 [shape = 's32[1]{0}', space=sflag, size = 0x4, scoped, tag = 'scoped memory for tpu_custom_call.1']
    #allocation11 [shape = 'u8[8192]{0}', space=vmem, size = 0x2000, scoped, tag = 'input window, operand 6, single buffered']
    #allocation12 [shape = 'u8[65536]{0}', space=vmem, size = 0x10000, scoped, tag = 'input window, operand 7, single buffered']
    #allocation13 [shape = 's32[1]{0}', space=sflag, size = 0x4, scoped, tag = 'scoped memory for tpu_custom_call.1']
    #allocation14 [shape = 'u8[65536]{0}', space=vmem, size = 0x10000, scoped, tag = 'input window, operand 8, single buffered']
    #allocation15 [shape = 'u8[16384]{0}', space=vmem, size = 0x4000, scoped, tag = 'output window, operand 0']
    %14 = vsyncpa [#allocation4], 0
    %s15 = scalar_lea.sflag [#allocation4], 1
    %16 = vsyncpa %s15, 0
    %17 = vsyncpa [#allocation7], 0
    %18 = vsyncpa [#allocation10], 0
    %19 = vsyncpa [#allocation13], 0
    %20 = vsyncpa [#allocation5], 0
    %s21 = scalar_lea.sflag [#allocation5], 1
    %22 = vsyncpa %s21, 0
    loop: start=0, step=1, limit=4
    $region2: #{tpu_custom_call.1} parent=1 // loop_pre_header
      _
    $region3: #{tpu_custom_call.1} parent=1 // loop_header
      %s24 = sphi 0, %s28
      %p25 = scmp.ge.s32.totalorder %s24, 4
      %s34 = sphi 0, %s36
      %s37 = sphi 0, %s34
      %s38 = sphi 0, %s37
      %s54 = sphi 0, %s38
      %s58 = sphi 0, %s58
      %s60 = sphi 0, %s58
      %s61 = sphi 0, %s60
      %s75 = sphi 0, %s61
      %s79 = sphi 0, %s79
      %s81 = sphi 0, %s79
      %s82 = sphi 0, %s81
      %s96 = sphi 0, %s82
      %s100 = sphi 0, %s100
      %s102 = sphi 0, %s100
      %s103 = sphi 0, %s102
      %s117 = sphi 0, %s103
      %s121 = sphi 0, %s121
      %s123 = sphi 0, %s121
      %s124 = sphi 0, %s123
      %s138 = sphi 0, %s124
      %s142 = sphi 0, %s142
      %s144 = sphi 0, %s142
      %s145 = sphi 0, %s144
      %s159 = sphi 0, %s145
      %s163 = sphi 0, %s163
      %s165 = sphi 0, %s163
      %s166 = sphi 0, %s165
      %s180 = sphi 0, %s166
      %s184 = sphi 0, %s184
      %s186 = sphi 0, %s184
      %s187 = sphi 0, %s186
      %s201 = sphi 0, %s187
      %s205 = sphi 0, %s205
      %s207 = sphi 0, %s205
      %s208 = sphi 0, %s207
      %s222 = sphi 0, %s208
      %s228 = sphi 0, %s230
      %s231 = sphi 0, %s228
      %s232 = sphi 0, %s231
      %s248 = sphi 0, %s232
    $region4: #{tpu_custom_call.1} parent=1 // loop_header_branch
      %27 = sbr.rel (%p25) target = $region8
    $region5: #{tpu_custom_call.1} parent=1 // loop_body
      %s29 = ssub.s32 %s24, 1
      %s30 = ssub.s32 %s24, 2
      %s31 = sadd.s32 %s24, 1
      %s32 = ssub.s32 %s24, %s31
      %p33 = scmp.eq.s32.totalorder %s32, 0
      %s35 = sadd.s32 %s34, 1
      %s36 = scalar_select %p33, %s34, %s35
      %p39 = pneg %p33
      %p40 = scmp.eq.s32.totalorder %s24, 1
      %p41 = por %p39, %p40
      %p42 = scmp.ne.s32.totalorder %s34, %s37
      %p43 = scmp.eq.s32.totalorder %s24, 0
      %p44 = por %p42, %p43
      %p45 = scmp.ne.s32.totalorder %s34, %s37
      %p46 = scmp.eq.s32.totalorder %s29, 1
      %p47 = por %p45, %p46
      %p48 = scmp.ne.s32.totalorder %s37, %s38
      %p49 = scmp.eq.s32.totalorder %s29, 0
      %p50 = por %p48, %p49
      %p51 = scmp.ne.s32.totalorder %s37, %s38
      %p52 = scmp.eq.s32.totalorder %s30, 1
      %p53 = por %p51, %p52
      %p55 = scmp.ne.s32.totalorder %s38, %s54
      %p56 = scmp.eq.s32.totalorder %s30, 0
      %p57 = por %p55, %p56
      %s59 = sadd.s32 %s58, 1
      %p62 = scmp.eq.s32.totalorder %s24, 1
      %p63 = scmp.ne.s32.totalorder %s58, %s60
      %p64 = scmp.eq.s32.totalorder %s24, 0
      %p65 = por %p63, %p64
      %p66 = scmp.ne.s32.totalorder %s58, %s60
      %p67 = scmp.eq.s32.totalorder %s29, 1
      %p68 = por %p66, %p67
      %p69 = scmp.ne.s32.totalorder %s60, %s61
      %p70 = scmp.eq.s32.totalorder %s29, 0
      %p71 = por %p69, %p70
      %p72 = scmp.ne.s32.totalorder %s60, %s61
      %p73 = scmp.eq.s32.totalorder %s30, 1
      %p74 = por %p72, %p73
      %p76 = scmp.ne.s32.totalorder %s61, %s75
      %p77 = scmp.eq.s32.totalorder %s30, 0
      %p78 = por %p76, %p77
      %s80 = sadd.s32 %s79, 1
      %p83 = scmp.eq.s32.totalorder %s24, 1
      %p84 = scmp.ne.s32.totalorder %s79, %s81
      %p85 = scmp.eq.s32.totalorder %s24, 0
      %p86 = por %p84, %p85
      %p87 = scmp.ne.s32.totalorder %s79, %s81
      %p88 = scmp.eq.s32.totalorder %s29, 1
      %p89 = por %p87, %p88
      %p90 = scmp.ne.s32.totalorder %s81, %s82
      %p91 = scmp.eq.s32.totalorder %s29, 0
      %p92 = por %p90, %p91
      %p93 = scmp.ne.s32.totalorder %s81, %s82
      %p94 = scmp.eq.s32.totalorder %s30, 1
      %p95 = por %p93, %p94
      %p97 = scmp.ne.s32.totalorder %s82, %s96
      %p98 = scmp.eq.s32.totalorder %s30, 0
      %p99 = por %p97, %p98
      %s101 = sadd.s32 %s100, 1
      %p104 = scmp.eq.s32.totalorder %s24, 1
      %p105 = scmp.ne.s32.totalorder %s100, %s102
      %p106 = scmp.eq.s32.totalorder %s24, 0
      %p107 = por %p105, %p106
      %p108 = scmp.ne.s32.totalorder %s100, %s102
      %p109 = scmp.eq.s32.totalorder %s29, 1
      %p110 = por %p108, %p109
      %p111 = scmp.ne.s32.totalorder %s102, %s103
      %p112 = scmp.eq.s32.totalorder %s29, 0
      %p113 = por %p111, %p112
      %p114 = scmp.ne.s32.totalorder %s102, %s103
      %p115 = scmp.eq.s32.totalorder %s30, 1
      %p116 = por %p114, %p115
      %p118 = scmp.ne.s32.totalorder %s103, %s117
      %p119 = scmp.eq.s32.totalorder %s30, 0
      %p120 = por %p118, %p119
      %s122 = sadd.s32 %s121, 1
      %p125 = scmp.eq.s32.totalorder %s24, 1
      %p126 = scmp.ne.s32.totalorder %s121, %s123
      %p127 = scmp.eq.s32.totalorder %s24, 0
      %p128 = por %p126, %p127
      %p129 = scmp.ne.s32.totalorder %s121, %s123
      %p130 = scmp.eq.s32.totalorder %s29, 1
      %p131 = por %p129, %p130
      %p132 = scmp.ne.s32.totalorder %s123, %s124
      %p133 = scmp.eq.s32.totalorder %s29, 0
      %p134 = por %p132, %p133
      %p135 = scmp.ne.s32.totalorder %s123, %s124
      %p136 = scmp.eq.s32.totalorder %s30, 1
      %p137 = por %p135, %p136
      %p139 = scmp.ne.s32.totalorder %s124, %s138
      %p140 = scmp.eq.s32.totalorder %s30, 0
      %p141 = por %p139, %p140
      %s143 = sadd.s32 %s142, 1
      %p146 = scmp.eq.s32.totalorder %s24, 1
      %p147 = scmp.ne.s32.totalorder %s142, %s144
      %p148 = scmp.eq.s32.totalorder %s24, 0
      %p149 = por %p147, %p148
      %p150 = scmp.ne.s32.totalorder %s142, %s144
      %p151 = scmp.eq.s32.totalorder %s29, 1
      %p152 = por %p150, %p151
      %p153 = scmp.ne.s32.totalorder %s144, %s145
      %p154 = scmp.eq.s32.totalorder %s29, 0
      %p155 = por %p153, %p154
      %p156 = scmp.ne.s32.totalorder %s144, %s145
      %p157 = scmp.eq.s32.totalorder %s30, 1
      %p158 = por %p156, %p157
      %p160 = scmp.ne.s32.totalorder %s145, %s159
      %p161 = scmp.eq.s32.totalorder %s30, 0
      %p162 = por %p160, %p161
      %s164 = sadd.s32 %s163, 1
      %p167 = scmp.eq.s32.totalorder %s24, 1
      %p168 = scmp.ne.s32.totalorder %s163, %s165
      %p169 = scmp.eq.s32.totalorder %s24, 0
      %p170 = por %p168, %p169
      %p171 = scmp.ne.s32.totalorder %s163, %s165
      %p172 = scmp.eq.s32.totalorder %s29, 1
      %p173 = por %p171, %p172
      %p174 = scmp.ne.s32.totalorder %s165, %s166
      %p175 = scmp.eq.s32.totalorder %s29, 0
      %p176 = por %p174, %p175
      %p177 = scmp.ne.s32.totalorder %s165, %s166
      %p178 = scmp.eq.s32.totalorder %s30, 1
      %p179 = por %p177, %p178
      %p181 = scmp.ne.s32.totalorder %s166, %s180
      %p182 = scmp.eq.s32.totalorder %s30, 0
      %p183 = por %p181, %p182
      %s185 = sadd.s32 %s184, 1
      %p188 = scmp.eq.s32.totalorder %s24, 1
      %p189 = scmp.ne.s32.totalorder %s184, %s186
      %p190 = scmp.eq.s32.totalorder %s24, 0
      %p191 = por %p189, %p190
      %p192 = scmp.ne.s32.totalorder %s184, %s186
      %p193 = scmp.eq.s32.totalorder %s29, 1
      %p194 = por %p192, %p193
      %p195 = scmp.ne.s32.totalorder %s186, %s187
      %p196 = scmp.eq.s32.totalorder %s29, 0
      %p197 = por %p195, %p196
      %p198 = scmp.ne.s32.totalorder %s186, %s187
      %p199 = scmp.eq.s32.totalorder %s30, 1
      %p200 = por %p198, %p199
      %p202 = scmp.ne.s32.totalorder %s187, %s201
      %p203 = scmp.eq.s32.totalorder %s30, 0
      %p204 = por %p202, %p203
      %s206 = sadd.s32 %s205, 1
      %p209 = scmp.eq.s32.totalorder %s24, 1
      %p210 = scmp.ne.s32.totalorder %s205, %s207
      %p211 = scmp.eq.s32.totalorder %s24, 0
      %p212 = por %p210, %p211
      %p213 = scmp.ne.s32.totalorder %s205, %s207
      %p214 = scmp.eq.s32.totalorder %s29, 1
      %p215 = por %p213, %p214
      %p216 = scmp.ne.s32.totalorder %s207, %s208
      %p217 = scmp.eq.s32.totalorder %s29, 0
      %p218 = por %p216, %p217
      %p219 = scmp.ne.s32.totalorder %s207, %s208
      %p220 = scmp.eq.s32.totalorder %s30, 1
      %p221 = por %p219, %p220
      %p223 = scmp.ne.s32.totalorder %s208, %s222
      %p224 = scmp.eq.s32.totalorder %s30, 0
      %p225 = por %p223, %p224
      %s226 = ssub.s32 %s24, %s31
      %p227 = scmp.eq.s32.totalorder %s226, 0
      %s229 = sadd.s32 %s228, 1
      %s230 = scalar_select %p227, %s228, %s229
      %p233 = pneg %p227
      %p234 = scmp.eq.s32.totalorder %s24, 1
      %p235 = por %p233, %p234
      %p236 = scmp.ne.s32.totalorder %s228, %s231
      %p237 = scmp.eq.s32.totalorder %s24, 0
      %p238 = por %p236, %p237
      %p239 = scmp.ne.s32.totalorder %s228, %s231
      %p240 = scmp.eq.s32.totalorder %s29, 1
      %p241 = por %p239, %p240
      %p242 = scmp.ne.s32.totalorder %s231, %s232
      %p243 = scmp.eq.s32.totalorder %s29, 0
      %p244 = por %p242, %p243
      %p245 = scmp.ne.s32.totalorder %s231, %s232
      %p246 = scmp.eq.s32.totalorder %s30, 1
      %p247 = por %p245, %p246
      %p249 = scmp.ne.s32.totalorder %s232, %s248
      %p250 = scmp.eq.s32.totalorder %s30, 0
      %p251 = por %p249, %p250
      %p252 = scmp.le.s32.totalorder 1, %s24
      %p253 = scmp.lt.s32.totalorder %s24, 3
      %p254 = pnand %p252, %p253
      %p255 = pneg %p254
      // Predicated region
      $region9: #{tpu_custom_call.1} parent=5 // pred_check
        _
      $region10: #{tpu_custom_call.1} parent=5 // pred_check_branch
        %257 = sbr.rel (%p254) target = $region12
      $region11: #{tpu_custom_call.1} parent=5 // pred_region
        %s258 = ssub.s32 %s24, 1
        // Predicated region
        $region13: #{tpu_custom_call.1} parent=11 // pred_check
          %p259 = pneg %p71
        $region14: #{tpu_custom_call.1} parent=11 // pred_check_branch
          %261 = sbr.rel (%p259) target = $region16
        $region15: #{tpu_custom_call.1} parent=11 // pred_region
          %s263 = ssub.s32 2048, 2048
          %264 = vsyncadd [#allocation7], %s263
          %s265 = sshll.u32 [#allocation6], 4
          %s266 = int_to_ptr.vmem [resolvable:$true] %s265
          %271 = dma.hbm_to_vmem [thread:$0]  %s1, 2048, %s266, [#allocation7], 256, 256, 16
        $region16: #{tpu_custom_call.1} parent=11 // pred_fallthru
          _
        // Predicated region
        $region17: #{tpu_custom_call.1} parent=11 // pred_check
          %p272 = pneg %p92
        $region18: #{tpu_custom_call.1} parent=11 // pred_check_branch
          %274 = sbr.rel (%p272) target = $region20
        $region19: #{tpu_custom_call.1} parent=11 // pred_region
          %s276 = ssub.s32 1024, 1024
          %277 = vsyncadd [#allocation7], %s276
          %s278 = sshll.u32 [#allocation8], 4
          %s279 = int_to_ptr.vmem [resolvable:$true] %s278
          %284 = dma.hbm_to_vmem [thread:$0]  %s2, 1024, %s279, [#allocation7], 128, 128, 8
        $region20: #{tpu_custom_call.1} parent=11 // pred_fallthru
          _
        // Predicated region
        $region21: #{tpu_custom_call.1} parent=11 // pred_check
          %p285 = pneg %p113
        $region22: #{tpu_custom_call.1} parent=11 // pred_check_branch
          %287 = sbr.rel (%p285) target = $region24
        $region23: #{tpu_custom_call.1} parent=11 // pred_region
          _
        $region24: #{tpu_custom_call.1} parent=11 // pred_fallthru
          _
        // Predicated region
        $region25: #{tpu_custom_call.1} parent=11 // pred_check
          %p288 = pneg %p134
        $region26: #{tpu_custom_call.1} parent=11 // pred_check_branch
          %290 = sbr.rel (%p288) target = $region28
        $region27: #{tpu_custom_call.1} parent=11 // pred_region
          _
        $region28: #{tpu_custom_call.1} parent=11 // pred_fallthru
          _
        // Predicated region
        $region29: #{tpu_custom_call.1} parent=11 // pred_check
          %p291 = pneg %p155
        $region30: #{tpu_custom_call.1} parent=11 // pred_check_branch
          %293 = sbr.rel (%p291) target = $region32
        $region31: #{tpu_custom_call.1} parent=11 // pred_region
          %s295 = ssub.s32 256, 256
          %296 = vsyncadd [#allocation10], %s295
          %s297 = sshll.u32 [#allocation9], 4
          %s298 = int_to_ptr.vmem [resolvable:$true] %s297
          %303 = dma.hbm_to_vmem [thread:$0]  %s5, 256, %s298, [#allocation10], 128, 128, 8
        $region32: #{tpu_custom_call.1} parent=11 // pred_fallthru
          _
        // Predicated region
        $region33: #{tpu_custom_call.1} parent=11 // pred_check
          %p304 = pneg %p176
        $region34: #{tpu_custom_call.1} parent=11 // pred_check_branch
          %306 = sbr.rel (%p304) target = $region36
        $region35: #{tpu_custom_call.1} parent=11 // pred_region
          %s308 = ssub.s32 256, 256
          %309 = vsyncadd [#allocation10], %s308
          %s310 = sshll.u32 [#allocation11], 4
          %s311 = int_to_ptr.vmem [resolvable:$true] %s310
          %316 = dma.hbm_to_vmem [thread:$0]  %s6, 256, %s311, [#allocation10], 128, 128, 8
        $region36: #{tpu_custom_call.1} parent=11 // pred_fallthru
          _
        // Predicated region
        $region37: #{tpu_custom_call.1} parent=11 // pred_check
          %p317 = pneg %p197
        $region38: #{tpu_custom_call.1} parent=11 // pred_check_branch
          %319 = sbr.rel (%p317) target = $region40
        $region39: #{tpu_custom_call.1} parent=11 // pred_region
          %s321 = ssub.s32 2048, 2048
          %322 = vsyncadd [#allocation13], %s321
          %s323 = sshll.u32 [#allocation12], 4
          %s324 = int_to_ptr.vmem [resolvable:$true] %s323
          %329 = dma.hbm_to_vmem [thread:$0]  %s7, 2048, %s324, [#allocation13], 128, 128, 8
        $region40: #{tpu_custom_call.1} parent=11 // pred_fallthru
          _
        // Predicated region
        $region41: #{tpu_custom_call.1} parent=11 // pred_check
          %p330 = pneg %p218
        $region42: #{tpu_custom_call.1} parent=11 // pred_check_branch
          %332 = sbr.rel (%p330) target = $region44
        $region43: #{tpu_custom_call.1} parent=11 // pred_region
          %s334 = ssub.s32 2048, 2048
          %335 = vsyncadd [#allocation13], %s334
          %s336 = sshll.u32 [#allocation14], 4
          %s337 = int_to_ptr.vmem [resolvable:$true] %s336
          %342 = dma.hbm_to_vmem [thread:$0]  %s8, 2048, %s337, [#allocation13], 128, 128, 8
        $region44: #{tpu_custom_call.1} parent=11 // pred_fallthru
          _
      $region12: #{tpu_custom_call.1} parent=5 // pred_fallthru
        _
      %p343 = scmp.lt.s32.totalorder %s24, 2
      // Predicated region
      $region45: #{tpu_custom_call.1} parent=5 // pred_check
        %p344 = pneg %p343
      $region46: #{tpu_custom_call.1} parent=5 // pred_check_branch
        %346 = sbr.rel (%p344) target = $region48
      $region47: #{tpu_custom_call.1} parent=5 // pred_region
        // Predicated region
        $region49: #{tpu_custom_call.1} parent=47 // pred_check
          %p347 = pneg %p44
        $region50: #{tpu_custom_call.1} parent=47 // pred_check_branch
          %349 = sbr.rel (%p347) target = $region52
        $region51: #{tpu_custom_call.1} parent=47 // pred_region
          %s350 = sand.u32 %s34, 1
          %s351 = scalar_lea.sflag [#allocation4], %s350
          %s352 = sand.u32 %s34, 1
          %s353 = smul.addr %s352, 16
          %s354 = scalar_lea.vmem [#allocation3], %s353
          %s356 = ssub.s32 256, 256
          %357 = vsyncadd %s351, %s356
          %s358 = smul.addr %s24, 2
          %s359 = smul.addr %s358, 128
          %s360 = scalar_lea.hbm %s0, %s359
          %s361 = sshll.u32 %s354, 4
          %s362 = int_to_ptr.vmem [resolvable:$true] %s361
          %367 = dma.hbm_to_vmem [thread:$0]  %s360, 256, %s362, %s351, 128, 128, 8
        $region52: #{tpu_custom_call.1} parent=47 // pred_fallthru
          _
      $region48: #{tpu_custom_call.1} parent=5 // pred_fallthru
        _
      %p368 = scmp.le.s32.totalorder 1, %s24
      %p369 = scmp.lt.s32.totalorder %s24, 3
      %p370 = pnand %p368, %p369
      %p371 = pneg %p370
      // Predicated region
      $region53: #{tpu_custom_call.1} parent=5 // pred_check
        _
      $region54: #{tpu_custom_call.1} parent=5 // pred_check_branch
        %373 = sbr.rel (%p370) target = $region56
      $region55: #{tpu_custom_call.1} parent=5 // pred_region
        %s374 = ssub.s32 %s24, 1
        %s375 = sand.u32 %s37, 1
        %s376 = scalar_lea.sflag [#allocation4], %s375
        %s377 = sand.u32 %s37, 1
        %s378 = smul.addr %s377, 16
        %s379 = scalar_lea.vmem [#allocation3], %s378
        // Predicated region
        $region57: #{tpu_custom_call.1} parent=55 // pred_check
          %p380 = pneg %p50
        $region58: #{tpu_custom_call.1} parent=55 // pred_check_branch
          %382 = sbr.rel (%p380) target = $region60
        $region59: #{tpu_custom_call.1} parent=55 // pred_region
          %383 = dma.done %s376, 256
        $region60: #{tpu_custom_call.1} parent=55 // pred_fallthru
          _
        // Predicated region
        $region61: #{tpu_custom_call.1} parent=55 // pred_check
          %p384 = pneg %p71
        $region62: #{tpu_custom_call.1} parent=55 // pred_check_branch
          %386 = sbr.rel (%p384) target = $region64
        $region63: #{tpu_custom_call.1} parent=55 // pred_region
          %387 = dma.done [#allocation7], 2048
        $region64: #{tpu_custom_call.1} parent=55 // pred_fallthru
          _
        // Predicated region
        $region65: #{tpu_custom_call.1} parent=55 // pred_check
          %p388 = pneg %p92
        $region66: #{tpu_custom_call.1} parent=55 // pred_check_branch
          %390 = sbr.rel (%p388) target = $region68
        $region67: #{tpu_custom_call.1} parent=55 // pred_region
          %391 = dma.done [#allocation7], 1024
        $region68: #{tpu_custom_call.1} parent=55 // pred_fallthru
          _
        // Predicated region
        $region69: #{tpu_custom_call.1} parent=55 // pred_check
          %p392 = pneg %p155
        $region70: #{tpu_custom_call.1} parent=55 // pred_check_branch
          %394 = sbr.rel (%p392) target = $region72
        $region71: #{tpu_custom_call.1} parent=55 // pred_region
          %395 = dma.done [#allocation10], 256
        $region72: #{tpu_custom_call.1} parent=55 // pred_fallthru
          _
        // Predicated region
        $region73: #{tpu_custom_call.1} parent=55 // pred_check
          %p396 = pneg %p176
        $region74: #{tpu_custom_call.1} parent=55 // pred_check_branch
          %398 = sbr.rel (%p396) target = $region76
        $region75: #{tpu_custom_call.1} parent=55 // pred_region
          %399 = dma.done [#allocation10], 256
        $region76: #{tpu_custom_call.1} parent=55 // pred_fallthru
          _
        // Predicated region
        $region77: #{tpu_custom_call.1} parent=55 // pred_check
          %p400 = pneg %p197
        $region78: #{tpu_custom_call.1} parent=55 // pred_check_branch
          %402 = sbr.rel (%p400) target = $region80
        $region79: #{tpu_custom_call.1} parent=55 // pred_region
          %403 = dma.done [#allocation13], 2048
        $region80: #{tpu_custom_call.1} parent=55 // pred_fallthru
          _
        // Predicated region
        $region81: #{tpu_custom_call.1} parent=55 // pred_check
          %p404 = pneg %p218
        $region82: #{tpu_custom_call.1} parent=55 // pred_check_branch
          %406 = sbr.rel (%p404) target = $region84
        $region83: #{tpu_custom_call.1} parent=55 // pred_region
          %407 = dma.done [#allocation13], 2048
        $region84: #{tpu_custom_call.1} parent=55 // pred_fallthru
          _
        %s408 = sand.u32 %s37, 1
        %s409 = scalar_lea.sflag [#allocation4], %s408
        %s410 = sand.u32 %s37, 1
        %s411 = smul.addr %s410, 16
        %s412 = scalar_lea.vmem [#allocation3], %s411
        %p413 = pneg %p50
        %p414 = pneg %p47
        %p415 = pneg %p71
        %p416 = pneg %p68
        %p417 = pneg %p92
        %p418 = pneg %p89
        %p419 = pneg %p113
        %p420 = pneg %p110
        %p421 = pneg %p134
        %p422 = pneg %p131
        %p423 = pneg %p155
        %p424 = pneg %p152
        %p425 = pneg %p176
        %p426 = pneg %p173
        %p427 = pneg %p197
        %p428 = pneg %p194
        %p429 = pneg %p218
        %p430 = pneg %p215
        %p431 = pneg %p244
        %p432 = pneg %p241
        %s433 = sand.u32 %s231, 1
        %s434 = scalar_lea.sflag [#allocation5], %s433
        %s435 = sand.u32 %s231, 1
        %s436 = smul.addr %s435, 16
        %s437 = scalar_lea.vmem [#allocation15], %s436
        %v438 = vld [vmem:[%s379] sm:$0xff]
        %v439 = vld [vmem:[%s379 + $0x8] sm:$0xff]
        %v440 = vld [vmem:[#allocation6] sm:$0xff]
        %v441 = vld [vmem:[#allocation6 + $0x8] sm:$0xff]
        %v442 = vld [vmem:[#allocation6 + $0x10] sm:$0xff]
        %v443 = vld [vmem:[#allocation6 + $0x18] sm:$0xff]
        %v444 = vld [vmem:[#allocation6 + $0x20] sm:$0xff]
        %v445 = vld [vmem:[#allocation6 + $0x28] sm:$0xff]
        %v446 = vld [vmem:[#allocation6 + $0x30] sm:$0xff]
        %v447 = vld [vmem:[#allocation6 + $0x38] sm:$0xff]
        %v448 = vld [vmem:[#allocation6 + $0x40] sm:$0xff]
        %v449 = vld [vmem:[#allocation6 + $0x48] sm:$0xff]
        %v450 = vld [vmem:[#allocation6 + $0x50] sm:$0xff]
        %v451 = vld [vmem:[#allocation6 + $0x58] sm:$0xff]
        %v452 = vld [vmem:[#allocation6 + $0x60] sm:$0xff]
        %v453 = vld [vmem:[#allocation6 + $0x68] sm:$0xff]
        %v454 = vld [vmem:[#allocation6 + $0x70] sm:$0xff]
        %v455 = vld [vmem:[#allocation6 + $0x78] sm:$0xff]
        %vm456 = vcmask 523264
        %v458 = vsel %vm456, %v438, 0
        %v461 = vsel %vm456, %v439, 0
        %463 = vmatprep.subr.mxu0 0.0
        %464 = vmatpush1.msra.mxu0 0.0
        %465 = vmatprep.subr.mxu0 0.0
        %466 = vmatpush1.msra.mxu0 0.0
        %467 = vmatprep.subr.mxu0 0.0
        %468 = vmatpush1.msra.mxu0 0.0
        %469 = vmatprep.subr.mxu0 0.0
        %470 = vmatpush1.msra.mxu0 0.0
        %471 = vmatprep.subr.mxu0 0.0
        %472 = vmatpush1.msra.mxu0 0.0
        %473 = vmatprep.subr.mxu0 0.0
        %474 = vmatpush1.msra.mxu0 0.0
        %475 = vmatprep.subr.mxu0 0.0
        %476 = vmatpush1.msra.mxu0 0.0
        %477 = vmatprep.subr.mxu0 0.0
        %478 = vmatpush1.msra.mxu0 0.0
        %479 = vmatprep.subr.mxu0 %v455
        %480 = vmatpush1.msra.mxu0 %v454
        %481 = vmatprep.subr.mxu0 %v453
        %482 = vmatpush1.msra.mxu0 %v452
        %483 = vmatprep.subr.mxu0 %v451
        %484 = vmatpush1.msra.mxu0 %v450
        %485 = vmatprep.subr.mxu0 %v449
        %486 = vmatpush1.msra.mxu0 %v448
        %487 = vmatprep.subr.mxu0 %v447
        %488 = vmatpush1.msra.mxu0 %v446
        %489 = vmatprep.subr.mxu0 %v445
        %490 = vmatpush1.msra.mxu0 %v444
        %491 = vmatprep.subr.mxu0 %v443
        %492 = vmatpush1.msra.mxu0 %v442
        %493 = vmatprep.subr.mxu0 %v441
        %494 = vmatpush1.msra.mxu0 %v440
        %495 = vmatprep.subr.mxu0 0.0
        %496 = vmatpush2.msra.mxu0 0.0
        %497 = vmatprep.subr.mxu0 0.0
        %498 = vmatpush2.msra.mxu0 0.0
        %499 = vmatprep.subr.mxu0 0.0
        %500 = vmatpush2.msra.mxu0 0.0
        %501 = vmatprep.subr.mxu0 0.0
        %502 = vmatpush2.msra.mxu0 0.0
        %503 = vmatprep.subr.mxu0 0.0
        %504 = vmatpush2.msra.mxu0 0.0
        %505 = vmatprep.subr.mxu0 0.0
        %506 = vmatpush2.msra.mxu0 0.0
        %507 = vmatprep.subr.mxu0 0.0
        %508 = vmatpush2.msra.mxu0 0.0
        %509 = vmatprep.subr.mxu0 0.0
        %510 = vmatpush2.msra.mxu0 0.0
        %511 = vmatprep.subr.mxu0 0.0
        %512 = vmatpush2.msra.mxu0 0.0
        %513 = vmatprep.subr.mxu0 0.0
        %514 = vmatpush2.msra.mxu0 0.0
        %515 = vmatprep.subr.mxu0 0.0
        %516 = vmatpush2.msra.mxu0 0.0
        %517 = vmatprep.subr.mxu0 0.0
        %518 = vmatpush2.msra.mxu0 0.0
        %519 = vmatprep.subr.mxu0 0.0
        %520 = vmatpush2.msra.mxu0 0.0
        %521 = vmatprep.subr.mxu0 0.0
        %522 = vmatpush2.msra.mxu0 0.0
        %523 = vmatprep.subr.mxu0 0.0
        %524 = vmatpush2.msra.mxu0 0.0
        %525 = vmatprep.subr.mxu0 0.0
        %526 = vmatpush2.msra.mxu0 0.0
        %527 = vmatprep.mubr.f32.mxu0 0.0
        %528 = vmatmul.mubr.f32.gmra.mxu0 %v458
        %v529 = vpop.f32.mrf.mxu0
        %v530 = vadd.f32 0.0, %v529
        %v531 = vpop.f32.mrf.mxu0
        %v532 = vadd.f32 0.0, %v531
        %533 = vmatprep.mubr.f32.mxu0 0.0
        %534 = vmatmul.mubr.f32.gmra.mxu0 %v461
        %v535 = vpop.f32.mrf.mxu0
        %v536 = vadd.f32 0.0, %v535
        %v537 = vpop.f32.mrf.mxu0
        %v538 = vadd.f32 0.0, %v537
        %539 = vdwg.mxu0
        %v540 = vmul.f32 %v530, %v530
        %v541 = vmul.f32 %v536, %v536
        %v542 = vld [vmem:[#allocation12] sm:$0xff]
        %v543 = vld [vmem:[#allocation12 + $0x8] sm:$0xff]
        %v544 = vld [vmem:[#allocation12 + $0x10] sm:$0xff]
        %v545 = vld [vmem:[#allocation12 + $0x18] sm:$0xff]
        %v546 = vld [vmem:[#allocation12 + $0x20] sm:$0xff]
        %v547 = vld [vmem:[#allocation12 + $0x28] sm:$0xff]
        %v548 = vld [vmem:[#allocation12 + $0x30] sm:$0xff]
        %v549 = vld [vmem:[#allocation12 + $0x38] sm:$0xff]
        %v550 = vld [vmem:[#allocation12 + $0x40] sm:$0xff]
        %v551 = vld [vmem:[#allocation12 + $0x48] sm:$0xff]
        %v552 = vld [vmem:[#allocation12 + $0x50] sm:$0xff]
        %v553 = vld [vmem:[#allocation12 + $0x58] sm:$0xff]
        %v554 = vld [vmem:[#allocation12 + $0x60] sm:$0xff]
        %v555 = vld [vmem:[#allocation12 + $0x68] sm:$0xff]
        %v556 = vld [vmem:[#allocation12 + $0x70] sm:$0xff]
        %v557 = vld [vmem:[#allocation12 + $0x78] sm:$0xff]
        %558 = vmatprep.subr.mxu0 0.0
        %559 = vmatpush1.msra.mxu0 %v557
        %560 = vmatprep.subr.mxu0 0.0
        %561 = vmatpush1.msra.mxu0 %v556
        %562 = vmatprep.subr.mxu0 0.0
        %563 = vmatpush1.msra.mxu0 %v555
        %564 = vmatprep.subr.mxu0 0.0
        %565 = vmatpush1.msra.mxu0 %v554
        %566 = vmatprep.subr.mxu0 0.0
        %567 = vmatpush1.msra.mxu0 %v553
        %568 = vmatprep.subr.mxu0 0.0
        %569 = vmatpush1.msra.mxu0 %v552
        %570 = vmatprep.subr.mxu0 0.0
        %571 = vmatpush1.msra.mxu0 %v551
        %572 = vmatprep.subr.mxu0 0.0
        %573 = vmatpush1.msra.mxu0 %v550
        %574 = vmatprep.subr.mxu0 0.0
        %575 = vmatpush1.msra.mxu0 %v549
        %576 = vmatprep.subr.mxu0 0.0
        %577 = vmatpush1.msra.mxu0 %v548
        %578 = vmatprep.subr.mxu0 0.0
        %579 = vmatpush1.msra.mxu0 %v547
        %580 = vmatprep.subr.mxu0 0.0
        %581 = vmatpush1.msra.mxu0 %v546
        %582 = vmatprep.subr.mxu0 0.0
        %583 = vmatpush1.msra.mxu0 %v545
        %584 = vmatprep.subr.mxu0 0.0
        %585 = vmatpush1.msra.mxu0 %v544
        %586 = vmatprep.subr.mxu0 0.0
        %587 = vmatpush1.msra.mxu0 %v543
        %588 = vmatprep.subr.mxu0 0.0
        %589 = vmatpush1.msra.mxu0 %v542
        %590 = vmatprep.subr.mxu0 0.0
        %591 = vmatpush2.msra.mxu0 0.0
        %592 = vmatprep.subr.mxu0 0.0
        %593 = vmatpush2.msra.mxu0 0.0
        %594 = vmatprep.subr.mxu0 0.0
        %595 = vmatpush2.msra.mxu0 0.0
        %596 = vmatprep.subr.mxu0 0.0
        %597 = vmatpush2.msra.mxu0 0.0
        %598 = vmatprep.subr.mxu0 0.0
        %599 = vmatpush2.msra.mxu0 0.0
        %600 = vmatprep.subr.mxu0 0.0
        %601 = vmatpush2.msra.mxu0 0.0
        %602 = vmatprep.subr.mxu0 0.0
        %603 = vmatpush2.msra.mxu0 0.0
        %604 = vmatprep.subr.mxu0 0.0
        %605 = vmatpush2.msra.mxu0 0.0
        %606 = vmatprep.subr.mxu0 0.0
        %607 = vmatpush2.msra.mxu0 0.0
        %608 = vmatprep.subr.mxu0 0.0
        %609 = vmatpush2.msra.mxu0 0.0
        %610 = vmatprep.subr.mxu0 0.0
        %611 = vmatpush2.msra.mxu0 0.0
        %612 = vmatprep.subr.mxu0 0.0
        %613 = vmatpush2.msra.mxu0 0.0
        %614 = vmatprep.subr.mxu0 0.0
        %615 = vmatpush2.msra.mxu0 0.0
        %616 = vmatprep.subr.mxu0 0.0
        %617 = vmatpush2.msra.mxu0 0.0
        %618 = vmatprep.subr.mxu0 0.0
        %619 = vmatpush2.msra.mxu0 0.0
        %620 = vmatprep.subr.mxu0 0.0
        %621 = vmatpush2.msra.mxu0 0.0
        %622 = vmatprep.mubr.f32.mxu0 0.0
        %623 = vmatmul.mubr.f32.gmra.mxu0 %v540
        %v624 = vpop.f32.mrf.mxu0
        %v625 = vadd.f32 1e-06, %v624
        %v626 = vpop.f32.mrf.mxu0
        %627 = vmatprep.mubr.f32.mxu0 0.0
        %628 = vmatmul.mubr.f32.gmra.mxu0 %v541
        %v629 = vpop.f32.mrf.mxu0
        %v630 = vadd.f32 1e-06, %v629
        %v631 = vpop.f32.mrf.mxu0
        %632 = vdwg.mxu0
        %v633 = vrsqrt.pop %v625
        %v634 = vrsqrt.pop %v630
        %v635 = vmul.f32 %v530, %v633
        %v636 = vmul.f32 %v536, %v634
        %v637 = vld [vmem:[%s4] sm:$0x1]
        %v639 = vlaneseq
        %v640 = vshrl.u32 %v639, 7
        %v641 = vsub.s32 0, %v640
        %v642 = vrot.slane %v637, %v641
        %v644 = vmul.f32 %v635, %v642
        %v645 = vmul.f32 %v636, %v642
        %v646 = vld [vmem:[#allocation9] sm:$0xff]
        %v647 = vld [vmem:[#allocation9 + $0x8] sm:$0xff]
        %v648 = vmul.f32 %v644, %v646
        %v649 = vmul.f32 %v645, %v647
        %v650 = vld [vmem:[#allocation14] sm:$0xff]
        %v651 = vld [vmem:[#allocation14 + $0x8] sm:$0xff]
        %v652 = vld [vmem:[#allocation14 + $0x10] sm:$0xff]
        %v653 = vld [vmem:[#allocation14 + $0x18] sm:$0xff]
        %v654 = vld [vmem:[#allocation14 + $0x20] sm:$0xff]
        %v655 = vld [vmem:[#allocation14 + $0x28] sm:$0xff]
        %v656 = vld [vmem:[#allocation14 + $0x30] sm:$0xff]
        %v657 = vld [vmem:[#allocation14 + $0x38] sm:$0xff]
        %v658 = vld [vmem:[#allocation14 + $0x40] sm:$0xff]
        %v659 = vld [vmem:[#allocation14 + $0x48] sm:$0xff]
        %v660 = vld [vmem:[#allocation14 + $0x50] sm:$0xff]
        %v661 = vld [vmem:[#allocation14 + $0x58] sm:$0xff]
        %v662 = vld [vmem:[#allocation14 + $0x60] sm:$0xff]
        %v663 = vld [vmem:[#allocation14 + $0x68] sm:$0xff]
        %v664 = vld [vmem:[#allocation14 + $0x70] sm:$0xff]
        %v665 = vld [vmem:[#allocation14 + $0x78] sm:$0xff]
        %666 = vmatprep.subr.mxu0 0.0
        %667 = vmatpush1.msra.mxu0 %v665
        %668 = vmatprep.subr.mxu0 0.0
        %669 = vmatpush1.msra.mxu0 %v664
        %670 = vmatprep.subr.mxu0 0.0
        %671 = vmatpush1.msra.mxu0 %v663
        %672 = vmatprep.subr.mxu0 0.0
        %673 = vmatpush1.msra.mxu0 %v662
        %674 = vmatprep.subr.mxu0 0.0
        %675 = vmatpush1.msra.mxu0 %v661
        %676 = vmatprep.subr.mxu0 0.0
        %677 = vmatpush1.msra.mxu0 %v660
        %678 = vmatprep.subr.mxu0 0.0
        %679 = vmatpush1.msra.mxu0 %v659
        %680 = vmatprep.subr.mxu0 0.0
        %681 = vmatpush1.msra.mxu0 %v658
        %682 = vmatprep.subr.mxu0 0.0
        %683 = vmatpush1.msra.mxu0 %v657
        %684 = vmatprep.subr.mxu0 0.0
        %685 = vmatpush1.msra.mxu0 %v656
        %686 = vmatprep.subr.mxu0 0.0
        %687 = vmatpush1.msra.mxu0 %v655
        %688 = vmatprep.subr.mxu0 0.0
        %689 = vmatpush1.msra.mxu0 %v654
        %690 = vmatprep.subr.mxu0 0.0
        %691 = vmatpush1.msra.mxu0 %v653
        %692 = vmatprep.subr.mxu0 0.0
        %693 = vmatpush1.msra.mxu0 %v652
        %694 = vmatprep.subr.mxu0 0.0
        %695 = vmatpush1.msra.mxu0 %v651
        %696 = vmatprep.subr.mxu0 0.0
        %697 = vmatpush1.msra.mxu0 %v650
        %698 = vmatprep.subr.mxu0 0.0
        %699 = vmatpush2.msra.mxu0 0.0
        %700 = vmatprep.subr.mxu0 0.0
        %701 = vmatpush2.msra.mxu0 0.0
        %702 = vmatprep.subr.mxu0 0.0
        %703 = vmatpush2.msra.mxu0 0.0
        %704 = vmatprep.subr.mxu0 0.0
        %705 = vmatpush2.msra.mxu0 0.0
        %706 = vmatprep.subr.mxu0 0.0
        %707 = vmatpush2.msra.mxu0 0.0
        %708 = vmatprep.subr.mxu0 0.0
        %709 = vmatpush2.msra.mxu0 0.0
        %710 = vmatprep.subr.mxu0 0.0
        %711 = vmatpush2.msra.mxu0 0.0
        %712 = vmatprep.subr.mxu0 0.0
        %713 = vmatpush2.msra.mxu0 0.0
        %714 = vmatprep.subr.mxu0 0.0
        %715 = vmatpush2.msra.mxu0 0.0
        %716 = vmatprep.subr.mxu0 0.0
        %717 = vmatpush2.msra.mxu0 0.0
        %718 = vmatprep.subr.mxu0 0.0
        %719 = vmatpush2.msra.mxu0 0.0
        %720 = vmatprep.subr.mxu0 0.0
        %721 = vmatpush2.msra.mxu0 0.0
        %722 = vmatprep.subr.mxu0 0.0
        %723 = vmatpush2.msra.mxu0 0.0
        %724 = vmatprep.subr.mxu0 0.0
        %725 = vmatpush2.msra.mxu0 0.0
        %726 = vmatprep.subr.mxu0 0.0
        %727 = vmatpush2.msra.mxu0 0.0
        %728 = vmatprep.subr.mxu0 0.0
        %729 = vmatpush2.msra.mxu0 0.0
        %730 = vmatprep.mubr.f32.mxu0 0.0
        %731 = vmatmul.mubr.f32.gmra.mxu0 %v644
        %v732 = vpop.f32.mrf.mxu0
        %v733 = vadd.f32 0.0, %v732
        %v734 = vpop.f32.mrf.mxu0
        %735 = vmatprep.mubr.f32.mxu0 0.0
        %736 = vmatmul.mubr.f32.gmra.mxu0 %v645
        %v737 = vpop.f32.mrf.mxu0
        %v738 = vadd.f32 0.0, %v737
        %v739 = vpop.f32.mrf.mxu0
        %740 = vdwg.mxu0
        %v741 = vld [vmem:[#allocation11] sm:$0xff]
        %v742 = vld [vmem:[#allocation11 + $0x8] sm:$0xff]
        %v743 = vmul.f32 %v733, %v741
        %v744 = vmul.f32 %v738, %v742
        %v745 = vadd.f32 %v648, %v743
        %v746 = vadd.f32 %v649, %v744
        %749 = vrot.lane.b32.xlu0 %v745, 112
        %v750 = vpop.permute.xlu0 %749
        %751 = vrot.lane.b32.xlu0 %v746, 112
        %v752 = vpop.permute.xlu0 %751
        %753 = vrot.lane.b32.xlu0 %v745, 96
        %v754 = vpop.permute.xlu0 %753
        %755 = vrot.lane.b32.xlu0 %v746, 96
        %v756 = vpop.permute.xlu0 %755
        %757 = vrot.lane.b32.xlu0 %v745, 80
        %v758 = vpop.permute.xlu0 %757
        %759 = vrot.lane.b32.xlu0 %v746, 80
        %v760 = vpop.permute.xlu0 %759
        %763 = vrot.lane.b32.xlu0 %v532, 112
        %v764 = vpop.permute.xlu0 %763
        %765 = vrot.lane.b32.xlu0 %v538, 112
        %v766 = vpop.permute.xlu0 %765
        %769 = vrot.lane.b32.xlu0 %v532, 96
        %v770 = vpop.permute.xlu0 %769
        %771 = vrot.lane.b32.xlu0 %v538, 96
        %v772 = vpop.permute.xlu0 %771
        %775 = vrot.lane.b32.xlu0 %v532, 80
        %v776 = vpop.permute.xlu0 %775
        %777 = vrot.lane.b32.xlu0 %v538, 80
        %v778 = vpop.permute.xlu0 %777
        %781 = vrot.lane.b32.xlu0 %v745, 64
        %v782 = vpop.permute.xlu0 %781
        %783 = vrot.lane.b32.xlu0 %v746, 64
        %v784 = vpop.permute.xlu0 %783
        %vm785 = vcmask 130048
        %v786 = vsel %vm785, %v745, 0
        %v788 = vsel %vm785, %v746, 0
        %v790 = vsel %vm785, %v782, 0
        %v792 = vsel %vm785, %v784, 0
        %794 = vmatprep.subr.mxu0 0.0
        %795 = vmatpush1.xpose.msra.mxu0 0.0
        %796 = vmatprep.subr.mxu0 0.0
        %797 = vmatpush1.xpose.msra.mxu0 0.0
        %798 = vmatprep.subr.mxu0 0.0
        %799 = vmatpush1.xpose.msra.mxu0 0.0
        %800 = vmatprep.subr.mxu0 0.0
        %801 = vmatpush1.xpose.msra.mxu0 0.0
        %802 = vmatprep.subr.mxu0 0.0
        %803 = vmatpush1.xpose.msra.mxu0 0.0
        %804 = vmatprep.subr.mxu0 0.0
        %805 = vmatpush1.xpose.msra.mxu0 0.0
        %806 = vmatprep.subr.mxu0 0.0
        %807 = vmatpush1.xpose.msra.mxu0 0.0
        %808 = vmatprep.subr.mxu0 0.0
        %809 = vmatpush1.xpose.msra.mxu0 0.0
        %810 = vmatprep.subr.mxu0 0.0
        %811 = vmatpush1.xpose.msra.mxu0 0.0
        %812 = vmatprep.subr.mxu0 0.0
        %813 = vmatpush1.xpose.msra.mxu0 0.0
        %814 = vmatprep.subr.mxu0 0.0
        %815 = vmatpush1.xpose.msra.mxu0 0.0
        %816 = vmatprep.subr.mxu0 0.0
        %817 = vmatpush1.xpose.msra.mxu0 0.0
        %818 = vmatprep.subr.mxu0 0.0
        %819 = vmatpush1.xpose.msra.mxu0 0.0
        %820 = vmatprep.subr.mxu0 0.0
        %821 = vmatpush1.xpose.msra.mxu0 0.0
        %822 = vmatprep.subr.mxu0 0.0
        %823 = vmatpush1.xpose.msra.mxu0 %v792
        %824 = vmatprep.subr.mxu0 0.0
        %825 = vmatpush1.xpose.msra.mxu0 %v790
        %826 = vmatprep.subr.mxu0 0.0
        %827 = vmatpush2.xpose.msra.mxu0 0.0
        %828 = vmatprep.subr.mxu0 0.0
        %829 = vmatpush2.xpose.msra.mxu0 0.0
        %830 = vmatprep.subr.mxu0 0.0
        %831 = vmatpush2.xpose.msra.mxu0 0.0
        %832 = vmatprep.subr.mxu0 0.0
        %833 = vmatpush2.xpose.msra.mxu0 0.0
        %834 = vmatprep.subr.mxu0 0.0
        %835 = vmatpush2.xpose.msra.mxu0 0.0
        %836 = vmatprep.subr.mxu0 0.0
        %837 = vmatpush2.xpose.msra.mxu0 0.0
        %838 = vmatprep.subr.mxu0 0.0
        %839 = vmatpush2.xpose.msra.mxu0 0.0
        %840 = vmatprep.subr.mxu0 0.0
        %841 = vmatpush2.xpose.msra.mxu0 0.0
        %842 = vmatprep.subr.mxu0 0.0
        %843 = vmatpush2.xpose.msra.mxu0 0.0
        %844 = vmatprep.subr.mxu0 0.0
        %845 = vmatpush2.xpose.msra.mxu0 0.0
        %846 = vmatprep.subr.mxu0 0.0
        %847 = vmatpush2.xpose.msra.mxu0 0.0
        %848 = vmatprep.subr.mxu0 0.0
        %849 = vmatpush2.xpose.msra.mxu0 0.0
        %850 = vmatprep.subr.mxu0 0.0
        %851 = vmatpush2.xpose.msra.mxu0 0.0
        %852 = vmatprep.subr.mxu0 0.0
        %853 = vmatpush2.xpose.msra.mxu0 0.0
        %854 = vmatprep.subr.mxu0 0.0
        %855 = vmatpush2.xpose.msra.mxu0 0.0
        %856 = vmatprep.subr.mxu0 0.0
        %857 = vmatpush2.xpose.msra.mxu0 0.0
        %858 = vmatprep.mubr.f32.mxu0 0.0
        %859 = vmatmul.mubr.f32.gmra.mxu0 %v786
        %v860 = vpop.f32.mrf.mxu0
        %v861 = vadd.f32 0.0, %v860
        %v862 = vpop.f32.mrf.mxu0
        %863 = vmatprep.mubr.f32.mxu0 0.0
        %864 = vmatmul.mubr.f32.gmra.mxu0 %v788
        %v865 = vpop.f32.mrf.mxu0
        %v866 = vadd.f32 0.0, %v865
        %v867 = vpop.f32.mrf.mxu0
        %868 = vdwg.mxu0
        %869 = vrot.lane.b32.xlu0 %v750, 64
        %v870 = vpop.permute.xlu0 %869
        %871 = vrot.lane.b32.xlu0 %v752, 64
        %v872 = vpop.permute.xlu0 %871
        %v873 = vsel %vm785, %v750, 0
        %v875 = vsel %vm785, %v752, 0
        %v877 = vsel %vm785, %v870, 0
        %v879 = vsel %vm785, %v872, 0
        %881 = vmatprep.subr.mxu0 0.0
        %882 = vmatpush1.xpose.msra.mxu0 0.0
        %883 = vmatprep.subr.mxu0 0.0
        %884 = vmatpush1.xpose.msra.mxu0 0.0
        %885 = vmatprep.subr.mxu0 0.0
        %886 = vmatpush1.xpose.msra.mxu0 0.0
        %887 = vmatprep.subr.mxu0 0.0
        %888 = vmatpush1.xpose.msra.mxu0 0.0
        %889 = vmatprep.subr.mxu0 0.0
        %890 = vmatpush1.xpose.msra.mxu0 0.0
        %891 = vmatprep.subr.mxu0 0.0
        %892 = vmatpush1.xpose.msra.mxu0 0.0
        %893 = vmatprep.subr.mxu0 0.0
        %894 = vmatpush1.xpose.msra.mxu0 0.0
        %895 = vmatprep.subr.mxu0 0.0
        %896 = vmatpush1.xpose.msra.mxu0 0.0
        %897 = vmatprep.subr.mxu0 0.0
        %898 = vmatpush1.xpose.msra.mxu0 0.0
        %899 = vmatprep.subr.mxu0 0.0
        %900 = vmatpush1.xpose.msra.mxu0 0.0
        %901 = vmatprep.subr.mxu0 0.0
        %902 = vmatpush1.xpose.msra.mxu0 0.0
        %903 = vmatprep.subr.mxu0 0.0
        %904 = vmatpush1.xpose.msra.mxu0 0.0
        %905 = vmatprep.subr.mxu0 0.0
        %906 = vmatpush1.xpose.msra.mxu0 0.0
        %907 = vmatprep.subr.mxu0 0.0
        %908 = vmatpush1.xpose.msra.mxu0 0.0
        %909 = vmatprep.subr.mxu0 0.0
        %910 = vmatpush1.xpose.msra.mxu0 %v879
        %911 = vmatprep.subr.mxu0 0.0
        %912 = vmatpush1.xpose.msra.mxu0 %v877
        %913 = vmatprep.subr.mxu0 0.0
        %914 = vmatpush2.xpose.msra.mxu0 0.0
        %915 = vmatprep.subr.mxu0 0.0
        %916 = vmatpush2.xpose.msra.mxu0 0.0
        %917 = vmatprep.subr.mxu0 0.0
        %918 = vmatpush2.xpose.msra.mxu0 0.0
        %919 = vmatprep.subr.mxu0 0.0
        %920 = vmatpush2.xpose.msra.mxu0 0.0
        %921 = vmatprep.subr.mxu0 0.0
        %922 = vmatpush2.xpose.msra.mxu0 0.0
        %923 = vmatprep.subr.mxu0 0.0
        %924 = vmatpush2.xpose.msra.mxu0 0.0
        %925 = vmatprep.subr.mxu0 0.0
        %926 = vmatpush2.xpose.msra.mxu0 0.0
        %927 = vmatprep.subr.mxu0 0.0
        %928 = vmatpush2.xpose.msra.mxu0 0.0
        %929 = vmatprep.subr.mxu0 0.0
        %930 = vmatpush2.xpose.msra.mxu0 0.0
        %931 = vmatprep.subr.mxu0 0.0
        %932 = vmatpush2.xpose.msra.mxu0 0.0
        %933 = vmatprep.subr.mxu0 0.0
        %934 = vmatpush2.xpose.msra.mxu0 0.0
        %935 = vmatprep.subr.mxu0 0.0
        %936 = vmatpush2.xpose.msra.mxu0 0.0
        %937 = vmatprep.subr.mxu0 0.0
        %938 = vmatpush2.xpose.msra.mxu0 0.0
        %939 = vmatprep.subr.mxu0 0.0
        %940 = vmatpush2.xpose.msra.mxu0 0.0
        %941 = vmatprep.subr.mxu0 0.0
        %942 = vmatpush2.xpose.msra.mxu0 0.0
        %943 = vmatprep.subr.mxu0 0.0
        %944 = vmatpush2.xpose.msra.mxu0 0.0
        %945 = vmatprep.mubr.f32.mxu0 0.0
        %946 = vmatmul.mubr.f32.gmra.mxu0 %v873
        %v947 = vpop.f32.mrf.mxu0
        %v948 = vadd.f32 0.0, %v947
        %v949 = vpop.f32.mrf.mxu0
        %950 = vmatprep.mubr.f32.mxu0 0.0
        %951 = vmatmul.mubr.f32.gmra.mxu0 %v875
        %v952 = vpop.f32.mrf.mxu0
        %v953 = vadd.f32 0.0, %v952
        %v954 = vpop.f32.mrf.mxu0
        %955 = vdwg.mxu0
        %956 = vrot.lane.b32.xlu0 %v754, 64
        %v957 = vpop.permute.xlu0 %956
        %958 = vrot.lane.b32.xlu0 %v756, 64
        %v959 = vpop.permute.xlu0 %958
        %v960 = vsel %vm785, %v754, 0
        %v962 = vsel %vm785, %v756, 0
        %v964 = vsel %vm785, %v957, 0
        %v966 = vsel %vm785, %v959, 0
        %968 = vmatprep.subr.mxu0 0.0
        %969 = vmatpush1.xpose.msra.mxu0 0.0
        %970 = vmatprep.subr.mxu0 0.0
        %971 = vmatpush1.xpose.msra.mxu0 0.0
        %972 = vmatprep.subr.mxu0 0.0
        %973 = vmatpush1.xpose.msra.mxu0 0.0
        %974 = vmatprep.subr.mxu0 0.0
        %975 = vmatpush1.xpose.msra.mxu0 0.0
        %976 = vmatprep.subr.mxu0 0.0
        %977 = vmatpush1.xpose.msra.mxu0 0.0
        %978 = vmatprep.subr.mxu0 0.0
        %979 = vmatpush1.xpose.msra.mxu0 0.0
        %980 = vmatprep.subr.mxu0 0.0
        %981 = vmatpush1.xpose.msra.mxu0 0.0
        %982 = vmatprep.subr.mxu0 0.0
        %983 = vmatpush1.xpose.msra.mxu0 0.0
        %984 = vmatprep.subr.mxu0 0.0
        %985 = vmatpush1.xpose.msra.mxu0 0.0
        %986 = vmatprep.subr.mxu0 0.0
        %987 = vmatpush1.xpose.msra.mxu0 0.0
        %988 = vmatprep.subr.mxu0 0.0
        %989 = vmatpush1.xpose.msra.mxu0 0.0
        %990 = vmatprep.subr.mxu0 0.0
        %991 = vmatpush1.xpose.msra.mxu0 0.0
        %992 = vmatprep.subr.mxu0 0.0
        %993 = vmatpush1.xpose.msra.mxu0 0.0
        %994 = vmatprep.subr.mxu0 0.0
        %995 = vmatpush1.xpose.msra.mxu0 0.0
        %996 = vmatprep.subr.mxu0 0.0
        %997 = vmatpush1.xpose.msra.mxu0 %v966
        %998 = vmatprep.subr.mxu0 0.0
        %999 = vmatpush1.xpose.msra.mxu0 %v964
        %1000 = vmatprep.subr.mxu0 0.0
        %1001 = vmatpush2.xpose.msra.mxu0 0.0
        %1002 = vmatprep.subr.mxu0 0.0
        %1003 = vmatpush2.xpose.msra.mxu0 0.0
        %1004 = vmatprep.subr.mxu0 0.0
        %1005 = vmatpush2.xpose.msra.mxu0 0.0
        %1006 = vmatprep.subr.mxu0 0.0
        %1007 = vmatpush2.xpose.msra.mxu0 0.0
        %1008 = vmatprep.subr.mxu0 0.0
        %1009 = vmatpush2.xpose.msra.mxu0 0.0
        %1010 = vmatprep.subr.mxu0 0.0
        %1011 = vmatpush2.xpose.msra.mxu0 0.0
        %1012 = vmatprep.subr.mxu0 0.0
        %1013 = vmatpush2.xpose.msra.mxu0 0.0
        %1014 = vmatprep.subr.mxu0 0.0
        %1015 = vmatpush2.xpose.msra.mxu0 0.0
        %1016 = vmatprep.subr.mxu0 0.0
        %1017 = vmatpush2.xpose.msra.mxu0 0.0
        %1018 = vmatprep.subr.mxu0 0.0
        %1019 = vmatpush2.xpose.msra.mxu0 0.0
        %1020 = vmatprep.subr.mxu0 0.0
        %1021 = vmatpush2.xpose.msra.mxu0 0.0
        %1022 = vmatprep.subr.mxu0 0.0
        %1023 = vmatpush2.xpose.msra.mxu0 0.0
        %1024 = vmatprep.subr.mxu0 0.0
        %1025 = vmatpush2.xpose.msra.mxu0 0.0
        %1026 = vmatprep.subr.mxu0 0.0
        %1027 = vmatpush2.xpose.msra.mxu0 0.0
        %1028 = vmatprep.subr.mxu0 0.0
        %1029 = vmatpush2.xpose.msra.mxu0 0.0
        %1030 = vmatprep.subr.mxu0 0.0
        %1031 = vmatpush2.xpose.msra.mxu0 0.0
        %1032 = vmatprep.mubr.f32.mxu0 0.0
        %1033 = vmatmul.mubr.f32.gmra.mxu0 %v960
        %v1034 = vpop.f32.mrf.mxu0
        %v1035 = vadd.f32 0.0, %v1034
        %v1036 = vpop.f32.mrf.mxu0
        %1037 = vmatprep.mubr.f32.mxu0 0.0
        %1038 = vmatmul.mubr.f32.gmra.mxu0 %v962
        %v1039 = vpop.f32.mrf.mxu0
        %v1040 = vadd.f32 0.0, %v1039
        %v1041 = vpop.f32.mrf.mxu0
        %1042 = vdwg.mxu0
        %1043 = vrot.lane.b32.xlu0 %v758, 64
        %v1044 = vpop.permute.xlu0 %1043
        %1045 = vrot.lane.b32.xlu0 %v760, 64
        %v1046 = vpop.permute.xlu0 %1045
        %v1047 = vsel %vm785, %v758, 0
        %v1049 = vsel %vm785, %v760, 0
        %v1051 = vsel %vm785, %v1044, 0
        %v1053 = vsel %vm785, %v1046, 0
        %1055 = vmatprep.subr.mxu0 0.0
        %1056 = vmatpush1.xpose.msra.mxu0 0.0
        %1057 = vmatprep.subr.mxu0 0.0
        %1058 = vmatpush1.xpose.msra.mxu0 0.0
        %1059 = vmatprep.subr.mxu0 0.0
        %1060 = vmatpush1.xpose.msra.mxu0 0.0
        %1061 = vmatprep.subr.mxu0 0.0
        %1062 = vmatpush1.xpose.msra.mxu0 0.0
        %1063 = vmatprep.subr.mxu0 0.0
        %1064 = vmatpush1.xpose.msra.mxu0 0.0
        %1065 = vmatprep.subr.mxu0 0.0
        %1066 = vmatpush1.xpose.msra.mxu0 0.0
        %1067 = vmatprep.subr.mxu0 0.0
        %1068 = vmatpush1.xpose.msra.mxu0 0.0
        %1069 = vmatprep.subr.mxu0 0.0
        %1070 = vmatpush1.xpose.msra.mxu0 0.0
        %1071 = vmatprep.subr.mxu0 0.0
        %1072 = vmatpush1.xpose.msra.mxu0 0.0
        %1073 = vmatprep.subr.mxu0 0.0
        %1074 = vmatpush1.xpose.msra.mxu0 0.0
        %1075 = vmatprep.subr.mxu0 0.0
        %1076 = vmatpush1.xpose.msra.mxu0 0.0
        %1077 = vmatprep.subr.mxu0 0.0
        %1078 = vmatpush1.xpose.msra.mxu0 0.0
        %1079 = vmatprep.subr.mxu0 0.0
        %1080 = vmatpush1.xpose.msra.mxu0 0.0
        %1081 = vmatprep.subr.mxu0 0.0
        %1082 = vmatpush1.xpose.msra.mxu0 0.0
        %1083 = vmatprep.subr.mxu0 0.0
        %1084 = vmatpush1.xpose.msra.mxu0 %v1053
        %1085 = vmatprep.subr.mxu0 0.0
        %1086 = vmatpush1.xpose.msra.mxu0 %v1051
        %1087 = vmatprep.subr.mxu0 0.0
        %1088 = vmatpush2.xpose.msra.mxu0 0.0
        %1089 = vmatprep.subr.mxu0 0.0
        %1090 = vmatpush2.xpose.msra.mxu0 0.0
        %1091 = vmatprep.subr.mxu0 0.0
        %1092 = vmatpush2.xpose.msra.mxu0 0.0
        %1093 = vmatprep.subr.mxu0 0.0
        %1094 = vmatpush2.xpose.msra.mxu0 0.0
        %1095 = vmatprep.subr.mxu0 0.0
        %1096 = vmatpush2.xpose.msra.mxu0 0.0
        %1097 = vmatprep.subr.mxu0 0.0
        %1098 = vmatpush2.xpose.msra.mxu0 0.0
        %1099 = vmatprep.subr.mxu0 0.0
        %1100 = vmatpush2.xpose.msra.mxu0 0.0
        %1101 = vmatprep.subr.mxu0 0.0
        %1102 = vmatpush2.xpose.msra.mxu0 0.0
        %1103 = vmatprep.subr.mxu0 0.0
        %1104 = vmatpush2.xpose.msra.mxu0 0.0
        %1105 = vmatprep.subr.mxu0 0.0
        %1106 = vmatpush2.xpose.msra.mxu0 0.0
        %1107 = vmatprep.subr.mxu0 0.0
        %1108 = vmatpush2.xpose.msra.mxu0 0.0
        %1109 = vmatprep.subr.mxu0 0.0
        %1110 = vmatpush2.xpose.msra.mxu0 0.0
        %1111 = vmatprep.subr.mxu0 0.0
        %1112 = vmatpush2.xpose.msra.mxu0 0.0
        %1113 = vmatprep.subr.mxu0 0.0
        %1114 = vmatpush2.xpose.msra.mxu0 0.0
        %1115 = vmatprep.subr.mxu0 0.0
        %1116 = vmatpush2.xpose.msra.mxu0 0.0
        %1117 = vmatprep.subr.mxu0 0.0
        %1118 = vmatpush2.xpose.msra.mxu0 0.0
        %1119 = vmatprep.mubr.f32.mxu0 0.0
        %1120 = vmatmul.mubr.f32.gmra.mxu0 %v1047
        %v1121 = vpop.f32.mrf.mxu0
        %v1122 = vadd.f32 0.0, %v1121
        %v1123 = vpop.f32.mrf.mxu0
        %1124 = vmatprep.mubr.f32.mxu0 0.0
        %1125 = vmatmul.mubr.f32.gmra.mxu0 %v1049
        %v1126 = vpop.f32.mrf.mxu0
        %v1127 = vadd.f32 0.0, %v1126
        %v1128 = vpop.f32.mrf.mxu0
        %1129 = vdwg.mxu0
        %v1130 = vsel %vm785, %v861, -inf
        %1131 = vmax.xlane.f32.xlu0 %v1130
        %v1132 = vpop.xlane.xlu0 %1131
        %v1133 = vsel %vm785, %v866, -inf
        %1134 = vmax.xlane.f32.xlu0 %v1133
        %v1135 = vpop.xlane.xlu0 %1134
        %v1136 = vsel %vm785, %v948, -inf
        %1137 = vmax.xlane.f32.xlu0 %v1136
        %v1138 = vpop.xlane.xlu0 %1137
        %v1139 = vsel %vm785, %v953, -inf
        %1140 = vmax.xlane.f32.xlu0 %v1139
        %v1141 = vpop.xlane.xlu0 %1140
        %v1142 = vsel %vm785, %v1035, -inf
        %1143 = vmax.xlane.f32.xlu0 %v1142
        %v1144 = vpop.xlane.xlu0 %1143
        %v1145 = vsel %vm785, %v1040, -inf
        %1146 = vmax.xlane.f32.xlu0 %v1145
        %v1147 = vpop.xlane.xlu0 %1146
        %v1148 = vsel %vm785, %v1122, -inf
        %1149 = vmax.xlane.f32.xlu0 %v1148
        %v1150 = vpop.xlane.xlu0 %1149
        %v1151 = vsel %vm785, %v1127, -inf
        %1152 = vmax.xlane.f32.xlu0 %v1151
        %v1153 = vpop.xlane.xlu0 %1152
        %v1154 = vsub.f32 %v861, %v1132
        %v1155 = vsub.f32 %v866, %v1135
        %v1156 = vsub.f32 %v948, %v1138
        %v1157 = vsub.f32 %v953, %v1141
        %v1158 = vsub.f32 %v1035, %v1144
        %v1159 = vsub.f32 %v1040, %v1147
        %v1160 = vsub.f32 %v1122, %v1150
        %v1161 = vsub.f32 %v1127, %v1153
        %v1162 = vmul.f32 %v1154, 1.442695
        %v1163 = vpow.pop %v1162
        %v1164 = vmul.f32 %v1155, 1.442695
        %v1165 = vpow.pop %v1164
        %v1166 = vmul.f32 %v1156, 1.442695
        %v1167 = vpow.pop %v1166
        %v1168 = vmul.f32 %v1157, 1.442695
        %v1169 = vpow.pop %v1168
        %v1170 = vmul.f32 %v1158, 1.442695
        %v1171 = vpow.pop %v1170
        %v1172 = vmul.f32 %v1159, 1.442695
        %v1173 = vpow.pop %v1172
        %v1174 = vmul.f32 %v1160, 1.442695
        %v1175 = vpow.pop %v1174
        %v1176 = vmul.f32 %v1161, 1.442695
        %v1177 = vpow.pop %v1176
        %v1178 = vsel %vm785, %v1163, 0.0
        %1179 = vadd.xlane.f32.xlu0 %v1178
        %v1180 = vpop.xlane.xlu0 %1179
        %v1181 = vsel %vm785, %v1165, 0.0
        %1182 = vadd.xlane.f32.xlu0 %v1181
        %v1183 = vpop.xlane.xlu0 %1182
        %v1184 = vsel %vm785, %v1167, 0.0
        %1185 = vadd.xlane.f32.xlu0 %v1184
        %v1186 = vpop.xlane.xlu0 %1185
        %v1187 = vsel %vm785, %v1169, 0.0
        %1188 = vadd.xlane.f32.xlu0 %v1187
        %v1189 = vpop.xlane.xlu0 %1188
        %v1190 = vsel %vm785, %v1171, 0.0
        %1191 = vadd.xlane.f32.xlu0 %v1190
        %v1192 = vpop.xlane.xlu0 %1191
        %v1193 = vsel %vm785, %v1173, 0.0
        %1194 = vadd.xlane.f32.xlu0 %v1193
        %v1195 = vpop.xlane.xlu0 %1194
        %v1196 = vsel %vm785, %v1175, 0.0
        %1197 = vadd.xlane.f32.xlu0 %v1196
        %v1198 = vpop.xlane.xlu0 %1197
        %v1199 = vsel %vm785, %v1177, 0.0
        %1200 = vadd.xlane.f32.xlu0 %v1199
        %v1201 = vpop.xlane.xlu0 %1200
        %v1202 = vrcp.pop %v1180
        %v1203 = vmul.f32 %v1163, %v1202
        %v1204 = vrcp.pop %v1183
        %v1205 = vmul.f32 %v1165, %v1204
        %v1206 = vrcp.pop %v1186
        %v1207 = vmul.f32 %v1167, %v1206
        %v1208 = vrcp.pop %v1189
        %v1209 = vmul.f32 %v1169, %v1208
        %v1210 = vrcp.pop %v1192
        %v1211 = vmul.f32 %v1171, %v1210
        %v1212 = vrcp.pop %v1195
        %v1213 = vmul.f32 %v1173, %v1212
        %v1214 = vrcp.pop %v1198
        %v1215 = vmul.f32 %v1175, %v1214
        %v1216 = vrcp.pop %v1201
        %v1217 = vmul.f32 %v1177, %v1216
        %v1219 = vsel %vm785, %v1203, 0
        %v1222 = vsel %vm785, %v1205, 0
        %1224 = vmatprep.subr.mxu0 0.0
        %1225 = vmatpush1.msra.mxu0 0.0
        %1226 = vmatprep.subr.mxu0 0.0
        %1227 = vmatpush1.msra.mxu0 0.0
        %1228 = vmatprep.subr.mxu0 0.0
        %1229 = vmatpush1.msra.mxu0 0.0
        %1230 = vmatprep.subr.mxu0 0.0
        %1231 = vmatpush1.msra.mxu0 0.0
        %1232 = vmatprep.subr.mxu0 0.0
        %1233 = vmatpush1.msra.mxu0 0.0
        %1234 = vmatprep.subr.mxu0 0.0
        %1235 = vmatpush1.msra.mxu0 0.0
        %1236 = vmatprep.subr.mxu0 0.0
        %1237 = vmatpush1.msra.mxu0 0.0
        %1238 = vmatprep.subr.mxu0 0.0
        %1239 = vmatpush1.msra.mxu0 0.0
        %1240 = vmatprep.subr.mxu0 0.0
        %1241 = vmatpush1.msra.mxu0 0.0
        %1242 = vmatprep.subr.mxu0 0.0
        %1243 = vmatpush1.msra.mxu0 0.0
        %1244 = vmatprep.subr.mxu0 0.0
        %1245 = vmatpush1.msra.mxu0 0.0
        %1246 = vmatprep.subr.mxu0 0.0
        %1247 = vmatpush1.msra.mxu0 0.0
        %1248 = vmatprep.subr.mxu0 0.0
        %1249 = vmatpush1.msra.mxu0 0.0
        %1250 = vmatprep.subr.mxu0 0.0
        %1251 = vmatpush1.msra.mxu0 0.0
        %1252 = vmatprep.subr.mxu0 0.0
        %1253 = vmatpush1.msra.mxu0 %v538
        %1254 = vmatprep.subr.mxu0 0.0
        %1255 = vmatpush1.msra.mxu0 %v532
        %1256 = vmatprep.subr.mxu0 0.0
        %1257 = vmatpush2.msra.mxu0 0.0
        %1258 = vmatprep.subr.mxu0 0.0
        %1259 = vmatpush2.msra.mxu0 0.0
        %1260 = vmatprep.subr.mxu0 0.0
        %1261 = vmatpush2.msra.mxu0 0.0
        %1262 = vmatprep.subr.mxu0 0.0
        %1263 = vmatpush2.msra.mxu0 0.0
        %1264 = vmatprep.subr.mxu0 0.0
        %1265 = vmatpush2.msra.mxu0 0.0
        %1266 = vmatprep.subr.mxu0 0.0
        %1267 = vmatpush2.msra.mxu0 0.0
        %1268 = vmatprep.subr.mxu0 0.0
        %1269 = vmatpush2.msra.mxu0 0.0
        %1270 = vmatprep.subr.mxu0 0.0
        %1271 = vmatpush2.msra.mxu0 0.0
        %1272 = vmatprep.subr.mxu0 0.0
        %1273 = vmatpush2.msra.mxu0 0.0
        %1274 = vmatprep.subr.mxu0 0.0
        %1275 = vmatpush2.msra.mxu0 0.0
        %1276 = vmatprep.subr.mxu0 0.0
        %1277 = vmatpush2.msra.mxu0 0.0
        %1278 = vmatprep.subr.mxu0 0.0
        %1279 = vmatpush2.msra.mxu0 0.0
        %1280 = vmatprep.subr.mxu0 0.0
        %1281 = vmatpush2.msra.mxu0 0.0
        %1282 = vmatprep.subr.mxu0 0.0
        %1283 = vmatpush2.msra.mxu0 0.0
        %1284 = vmatprep.subr.mxu0 0.0
        %1285 = vmatpush2.msra.mxu0 0.0
        %1286 = vmatprep.subr.mxu0 0.0
        %1287 = vmatpush2.msra.mxu0 0.0
        %1288 = vmatprep.mubr.f32.mxu0 0.0
        %1289 = vmatmul.mubr.f32.gmra.mxu0 %v1219
        %v1290 = vpop.f32.mrf.mxu0
        %v1291 = vadd.f32 0.0, %v1290
        %v1292 = vpop.f32.mrf.mxu0
        %1293 = vmatprep.mubr.f32.mxu0 0.0
        %1294 = vmatmul.mubr.f32.gmra.mxu0 %v1222
        %v1295 = vpop.f32.mrf.mxu0
        %v1296 = vadd.f32 0.0, %v1295
        %v1297 = vpop.f32.mrf.mxu0
        %1298 = vdwg.mxu0
        %v1300 = vsel %vm785, %v1207, 0
        %v1303 = vsel %vm785, %v1209, 0
        %1305 = vmatprep.subr.mxu0 0.0
        %1306 = vmatpush1.msra.mxu0 0.0
        %1307 = vmatprep.subr.mxu0 0.0
        %1308 = vmatpush1.msra.mxu0 0.0
        %1309 = vmatprep.subr.mxu0 0.0
        %1310 = vmatpush1.msra.mxu0 0.0
        %1311 = vmatprep.subr.mxu0 0.0
        %1312 = vmatpush1.msra.mxu0 0.0
        %1313 = vmatprep.subr.mxu0 0.0
        %1314 = vmatpush1.msra.mxu0 0.0
        %1315 = vmatprep.subr.mxu0 0.0
        %1316 = vmatpush1.msra.mxu0 0.0
        %1317 = vmatprep.subr.mxu0 0.0
        %1318 = vmatpush1.msra.mxu0 0.0
        %1319 = vmatprep.subr.mxu0 0.0
        %1320 = vmatpush1.msra.mxu0 0.0
        %1321 = vmatprep.subr.mxu0 0.0
        %1322 = vmatpush1.msra.mxu0 0.0
        %1323 = vmatprep.subr.mxu0 0.0
        %1324 = vmatpush1.msra.mxu0 0.0
        %1325 = vmatprep.subr.mxu0 0.0
        %1326 = vmatpush1.msra.mxu0 0.0
        %1327 = vmatprep.subr.mxu0 0.0
        %1328 = vmatpush1.msra.mxu0 0.0
        %1329 = vmatprep.subr.mxu0 0.0
        %1330 = vmatpush1.msra.mxu0 0.0
        %1331 = vmatprep.subr.mxu0 0.0
        %1332 = vmatpush1.msra.mxu0 0.0
        %1333 = vmatprep.subr.mxu0 0.0
        %1334 = vmatpush1.msra.mxu0 %v766
        %1335 = vmatprep.subr.mxu0 0.0
        %1336 = vmatpush1.msra.mxu0 %v764
        %1337 = vmatprep.subr.mxu0 0.0
        %1338 = vmatpush2.msra.mxu0 0.0
        %1339 = vmatprep.subr.mxu0 0.0
        %1340 = vmatpush2.msra.mxu0 0.0
        %1341 = vmatprep.subr.mxu0 0.0
        %1342 = vmatpush2.msra.mxu0 0.0
        %1343 = vmatprep.subr.mxu0 0.0
        %1344 = vmatpush2.msra.mxu0 0.0
        %1345 = vmatprep.subr.mxu0 0.0
        %1346 = vmatpush2.msra.mxu0 0.0
        %1347 = vmatprep.subr.mxu0 0.0
        %1348 = vmatpush2.msra.mxu0 0.0
        %1349 = vmatprep.subr.mxu0 0.0
        %1350 = vmatpush2.msra.mxu0 0.0
        %1351 = vmatprep.subr.mxu0 0.0
        %1352 = vmatpush2.msra.mxu0 0.0
        %1353 = vmatprep.subr.mxu0 0.0
        %1354 = vmatpush2.msra.mxu0 0.0
        %1355 = vmatprep.subr.mxu0 0.0
        %1356 = vmatpush2.msra.mxu0 0.0
        %1357 = vmatprep.subr.mxu0 0.0
        %1358 = vmatpush2.msra.mxu0 0.0
        %1359 = vmatprep.subr.mxu0 0.0
        %1360 = vmatpush2.msra.mxu0 0.0
        %1361 = vmatprep.subr.mxu0 0.0
        %1362 = vmatpush2.msra.mxu0 0.0
        %1363 = vmatprep.subr.mxu0 0.0
        %1364 = vmatpush2.msra.mxu0 0.0
        %1365 = vmatprep.subr.mxu0 0.0
        %1366 = vmatpush2.msra.mxu0 0.0
        %1367 = vmatprep.subr.mxu0 0.0
        %1368 = vmatpush2.msra.mxu0 0.0
        %1369 = vmatprep.mubr.f32.mxu0 0.0
        %1370 = vmatmul.mubr.f32.gmra.mxu0 %v1300
        %v1371 = vpop.f32.mrf.mxu0
        %v1372 = vadd.f32 0.0, %v1371
        %v1373 = vpop.f32.mrf.mxu0
        %1374 = vmatprep.mubr.f32.mxu0 0.0
        %1375 = vmatmul.mubr.f32.gmra.mxu0 %v1303
        %v1376 = vpop.f32.mrf.mxu0
        %v1377 = vadd.f32 0.0, %v1376
        %v1378 = vpop.f32.mrf.mxu0
        %1379 = vdwg.mxu0
        %v1381 = vsel %vm785, %v1211, 0
        %v1384 = vsel %vm785, %v1213, 0
        %1386 = vmatprep.subr.mxu0 0.0
        %1387 = vmatpush1.msra.mxu0 0.0
        %1388 = vmatprep.subr.mxu0 0.0
        %1389 = vmatpush1.msra.mxu0 0.0
        %1390 = vmatprep.subr.mxu0 0.0
        %1391 = vmatpush1.msra.mxu0 0.0
        %1392 = vmatprep.subr.mxu0 0.0
        %1393 = vmatpush1.msra.mxu0 0.0
        %1394 = vmatprep.subr.mxu0 0.0
        %1395 = vmatpush1.msra.mxu0 0.0
        %1396 = vmatprep.subr.mxu0 0.0
        %1397 = vmatpush1.msra.mxu0 0.0
        %1398 = vmatprep.subr.mxu0 0.0
        %1399 = vmatpush1.msra.mxu0 0.0
        %1400 = vmatprep.subr.mxu0 0.0
        %1401 = vmatpush1.msra.mxu0 0.0
        %1402 = vmatprep.subr.mxu0 0.0
        %1403 = vmatpush1.msra.mxu0 0.0
        %1404 = vmatprep.subr.mxu0 0.0
        %1405 = vmatpush1.msra.mxu0 0.0
        %1406 = vmatprep.subr.mxu0 0.0
        %1407 = vmatpush1.msra.mxu0 0.0
        %1408 = vmatprep.subr.mxu0 0.0
        %1409 = vmatpush1.msra.mxu0 0.0
        %1410 = vmatprep.subr.mxu0 0.0
        %1411 = vmatpush1.msra.mxu0 0.0
        %1412 = vmatprep.subr.mxu0 0.0
        %1413 = vmatpush1.msra.mxu0 0.0
        %1414 = vmatprep.subr.mxu0 0.0
        %1415 = vmatpush1.msra.mxu0 %v772
        %1416 = vmatprep.subr.mxu0 0.0
        %1417 = vmatpush1.msra.mxu0 %v770
        %1418 = vmatprep.subr.mxu0 0.0
        %1419 = vmatpush2.msra.mxu0 0.0
        %1420 = vmatprep.subr.mxu0 0.0
        %1421 = vmatpush2.msra.mxu0 0.0
        %1422 = vmatprep.subr.mxu0 0.0
        %1423 = vmatpush2.msra.mxu0 0.0
        %1424 = vmatprep.subr.mxu0 0.0
        %1425 = vmatpush2.msra.mxu0 0.0
        %1426 = vmatprep.subr.mxu0 0.0
        %1427 = vmatpush2.msra.mxu0 0.0
        %1428 = vmatprep.subr.mxu0 0.0
        %1429 = vmatpush2.msra.mxu0 0.0
        %1430 = vmatprep.subr.mxu0 0.0
        %1431 = vmatpush2.msra.mxu0 0.0
        %1432 = vmatprep.subr.mxu0 0.0
        %1433 = vmatpush2.msra.mxu0 0.0
        %1434 = vmatprep.subr.mxu0 0.0
        %1435 = vmatpush2.msra.mxu0 0.0
        %1436 = vmatprep.subr.mxu0 0.0
        %1437 = vmatpush2.msra.mxu0 0.0
        %1438 = vmatprep.subr.mxu0 0.0
        %1439 = vmatpush2.msra.mxu0 0.0
        %1440 = vmatprep.subr.mxu0 0.0
        %1441 = vmatpush2.msra.mxu0 0.0
        %1442 = vmatprep.subr.mxu0 0.0
        %1443 = vmatpush2.msra.mxu0 0.0
        %1444 = vmatprep.subr.mxu0 0.0
        %1445 = vmatpush2.msra.mxu0 0.0
        %1446 = vmatprep.subr.mxu0 0.0
        %1447 = vmatpush2.msra.mxu0 0.0
        %1448 = vmatprep.subr.mxu0 0.0
        %1449 = vmatpush2.msra.mxu0 0.0
        %1450 = vmatprep.mubr.f32.mxu0 0.0
        %1451 = vmatmul.mubr.f32.gmra.mxu0 %v1381
        %v1452 = vpop.f32.mrf.mxu0
        %v1453 = vadd.f32 0.0, %v1452
        %v1454 = vpop.f32.mrf.mxu0
        %1455 = vmatprep.mubr.f32.mxu0 0.0
        %1456 = vmatmul.mubr.f32.gmra.mxu0 %v1384
        %v1457 = vpop.f32.mrf.mxu0
        %v1458 = vadd.f32 0.0, %v1457
        %v1459 = vpop.f32.mrf.mxu0
        %1460 = vdwg.mxu0
        %v1462 = vsel %vm785, %v1215, 0
        %v1465 = vsel %vm785, %v1217, 0
        %1467 = vmatprep.subr.mxu0 0.0
        %1468 = vmatpush1.msra.mxu0 0.0
        %1469 = vmatprep.subr.mxu0 0.0
        %1470 = vmatpush1.msra.mxu0 0.0
        %1471 = vmatprep.subr.mxu0 0.0
        %1472 = vmatpush1.msra.mxu0 0.0
        %1473 = vmatprep.subr.mxu0 0.0
        %1474 = vmatpush1.msra.mxu0 0.0
        %1475 = vmatprep.subr.mxu0 0.0
        %1476 = vmatpush1.msra.mxu0 0.0
        %1477 = vmatprep.subr.mxu0 0.0
        %1478 = vmatpush1.msra.mxu0 0.0
        %1479 = vmatprep.subr.mxu0 0.0
        %1480 = vmatpush1.msra.mxu0 0.0
        %1481 = vmatprep.subr.mxu0 0.0
        %1482 = vmatpush1.msra.mxu0 0.0
        %1483 = vmatprep.subr.mxu0 0.0
        %1484 = vmatpush1.msra.mxu0 0.0
        %1485 = vmatprep.subr.mxu0 0.0
        %1486 = vmatpush1.msra.mxu0 0.0
        %1487 = vmatprep.subr.mxu0 0.0
        %1488 = vmatpush1.msra.mxu0 0.0
        %1489 = vmatprep.subr.mxu0 0.0
        %1490 = vmatpush1.msra.mxu0 0.0
        %1491 = vmatprep.subr.mxu0 0.0
        %1492 = vmatpush1.msra.mxu0 0.0
        %1493 = vmatprep.subr.mxu0 0.0
        %1494 = vmatpush1.msra.mxu0 0.0
        %1495 = vmatprep.subr.mxu0 0.0
        %1496 = vmatpush1.msra.mxu0 %v778
        %1497 = vmatprep.subr.mxu0 0.0
        %1498 = vmatpush1.msra.mxu0 %v776
        %1499 = vmatprep.subr.mxu0 0.0
        %1500 = vmatpush2.msra.mxu0 0.0
        %1501 = vmatprep.subr.mxu0 0.0
        %1502 = vmatpush2.msra.mxu0 0.0
        %1503 = vmatprep.subr.mxu0 0.0
        %1504 = vmatpush2.msra.mxu0 0.0
        %1505 = vmatprep.subr.mxu0 0.0
        %1506 = vmatpush2.msra.mxu0 0.0
        %1507 = vmatprep.subr.mxu0 0.0
        %1508 = vmatpush2.msra.mxu0 0.0
        %1509 = vmatprep.subr.mxu0 0.0
        %1510 = vmatpush2.msra.mxu0 0.0
        %1511 = vmatprep.subr.mxu0 0.0
        %1512 = vmatpush2.msra.mxu0 0.0
        %1513 = vmatprep.subr.mxu0 0.0
        %1514 = vmatpush2.msra.mxu0 0.0
        %1515 = vmatprep.subr.mxu0 0.0
        %1516 = vmatpush2.msra.mxu0 0.0
        %1517 = vmatprep.subr.mxu0 0.0
        %1518 = vmatpush2.msra.mxu0 0.0
        %1519 = vmatprep.subr.mxu0 0.0
        %1520 = vmatpush2.msra.mxu0 0.0
        %1521 = vmatprep.subr.mxu0 0.0
        %1522 = vmatpush2.msra.mxu0 0.0
        %1523 = vmatprep.subr.mxu0 0.0
        %1524 = vmatpush2.msra.mxu0 0.0
        %1525 = vmatprep.subr.mxu0 0.0
        %1526 = vmatpush2.msra.mxu0 0.0
        %1527 = vmatprep.subr.mxu0 0.0
        %1528 = vmatpush2.msra.mxu0 0.0
        %1529 = vmatprep.subr.mxu0 0.0
        %1530 = vmatpush2.msra.mxu0 0.0
        %1531 = vmatprep.mubr.f32.mxu0 0.0
        %1532 = vmatmul.mubr.f32.gmra.mxu0 %v1462
        %v1533 = vpop.f32.mrf.mxu0
        %v1534 = vadd.f32 0.0, %v1533
        %v1535 = vpop.f32.mrf.mxu0
        %1536 = vmatprep.mubr.f32.mxu0 0.0
        %1537 = vmatmul.mubr.f32.gmra.mxu0 %v1465
        %v1538 = vpop.f32.mrf.mxu0
        %v1539 = vadd.f32 0.0, %v1538
        %v1540 = vpop.f32.mrf.mxu0
        %1541 = vdwg.mxu0
        %1542 = vst.msk [vmem:[#allocation2] sm:$0xff] %vm785, %v1291
        %1543 = vst.msk [vmem:[#allocation2 + $0x8] sm:$0xff] %vm785, %v1296
        %1546 = vrot.lane.b32.xlu0 %v1372, 16
        %v1547 = vpop.permute.xlu0 %1546
        %1548 = vrot.lane.b32.xlu0 %v1377, 16
        %v1549 = vpop.permute.xlu0 %1548
        %vm1552 = vcmask 261248
        %1553 = vst.msk [vmem:[#allocation2] sm:$0xff] %vm1552, %v1547
        %1554 = vst.msk [vmem:[#allocation2 + $0x8] sm:$0xff] %vm1552, %v1549
        %1557 = vrot.lane.b32.xlu0 %v1453, 32
        %v1558 = vpop.permute.xlu0 %1557
        %1559 = vrot.lane.b32.xlu0 %v1458, 32
        %v1560 = vpop.permute.xlu0 %1559
        %vm1563 = vcmask 392448
        %1564 = vst.msk [vmem:[#allocation2] sm:$0xff] %vm1563, %v1558
        %1565 = vst.msk [vmem:[#allocation2 + $0x8] sm:$0xff] %vm1563, %v1560
        %1568 = vrot.lane.b32.xlu0 %v1534, 48
        %v1569 = vpop.permute.xlu0 %1568
        %1570 = vrot.lane.b32.xlu0 %v1539, 48
        %v1571 = vpop.permute.xlu0 %1570
        %vm1574 = vcmask 523648
        %1575 = vst.msk [vmem:[#allocation2] sm:$0xff] %vm1574, %v1569
        %1576 = vst.msk [vmem:[#allocation2 + $0x8] sm:$0xff] %vm1574, %v1571
        %v1577 = vld [vmem:[#allocation2] sm:$0xff]
        %v1578 = vld [vmem:[#allocation2 + $0x8] sm:$0xff]
        %v1579 = vld [vmem:[#allocation8] sm:$0xff]
        %v1580 = vld [vmem:[#allocation8 + $0x8] sm:$0xff]
        %v1581 = vld [vmem:[#allocation8 + $0x10] sm:$0xff]
        %v1582 = vld [vmem:[#allocation8 + $0x18] sm:$0xff]
        %v1583 = vld [vmem:[#allocation8 + $0x20] sm:$0xff]
        %v1584 = vld [vmem:[#allocation8 + $0x28] sm:$0xff]
        %v1585 = vld [vmem:[#allocation8 + $0x30] sm:$0xff]
        %v1586 = vld [vmem:[#allocation8 + $0x38] sm:$0xff]
        %v1587 = vld [vmem:[%s3] sm:$0x1]
        %v1589 = vlaneseq
        %v1590 = vshrl.u32 %v1589, 7
        %v1591 = vsub.s32 0, %v1590
        %v1592 = vrot.slane %v1587, %v1591
        %v1595 = vsel %vm456, %v1577, 0
        %v1598 = vsel %vm456, %v1578, 0
        %1600 = vmatprep.subr.mxu0 0.0
        %1601 = vmatpush1.msra.mxu0 0.0
        %1602 = vmatprep.subr.mxu0 0.0
        %1603 = vmatpush1.msra.mxu0 0.0
        %1604 = vmatprep.subr.mxu0 0.0
        %1605 = vmatpush1.msra.mxu0 0.0
        %1606 = vmatprep.subr.mxu0 0.0
        %1607 = vmatpush1.msra.mxu0 0.0
        %1608 = vmatprep.subr.mxu0 0.0
        %1609 = vmatpush1.msra.mxu0 0.0
        %1610 = vmatprep.subr.mxu0 0.0
        %1611 = vmatpush1.msra.mxu0 0.0
        %1612 = vmatprep.subr.mxu0 0.0
        %1613 = vmatpush1.msra.mxu0 0.0
        %1614 = vmatprep.subr.mxu0 0.0
        %1615 = vmatpush1.msra.mxu0 0.0
        %1616 = vmatprep.subr.mxu0 0.0
        %1617 = vmatpush1.msra.mxu0 %v1586
        %1618 = vmatprep.subr.mxu0 0.0
        %1619 = vmatpush1.msra.mxu0 %v1585
        %1620 = vmatprep.subr.mxu0 0.0
        %1621 = vmatpush1.msra.mxu0 %v1584
        %1622 = vmatprep.subr.mxu0 0.0
        %1623 = vmatpush1.msra.mxu0 %v1583
        %1624 = vmatprep.subr.mxu0 0.0
        %1625 = vmatpush1.msra.mxu0 %v1582
        %1626 = vmatprep.subr.mxu0 0.0
        %1627 = vmatpush1.msra.mxu0 %v1581
        %1628 = vmatprep.subr.mxu0 0.0
        %1629 = vmatpush1.msra.mxu0 %v1580
        %1630 = vmatprep.subr.mxu0 0.0
        %1631 = vmatpush1.msra.mxu0 %v1579
        %1632 = vmatprep.subr.mxu0 0.0
        %1633 = vmatpush2.msra.mxu0 0.0
        %1634 = vmatprep.subr.mxu0 0.0
        %1635 = vmatpush2.msra.mxu0 0.0
        %1636 = vmatprep.subr.mxu0 0.0
        %1637 = vmatpush2.msra.mxu0 0.0
        %1638 = vmatprep.subr.mxu0 0.0
        %1639 = vmatpush2.msra.mxu0 0.0
        %1640 = vmatprep.subr.mxu0 0.0
        %1641 = vmatpush2.msra.mxu0 0.0
        %1642 = vmatprep.subr.mxu0 0.0
        %1643 = vmatpush2.msra.mxu0 0.0
        %1644 = vmatprep.subr.mxu0 0.0
        %1645 = vmatpush2.msra.mxu0 0.0
        %1646 = vmatprep.subr.mxu0 0.0
        %1647 = vmatpush2.msra.mxu0 0.0
        %1648 = vmatprep.subr.mxu0 0.0
        %1649 = vmatpush2.msra.mxu0 0.0
        %1650 = vmatprep.subr.mxu0 0.0
        %1651 = vmatpush2.msra.mxu0 0.0
        %1652 = vmatprep.subr.mxu0 0.0
        %1653 = vmatpush2.msra.mxu0 0.0
        %1654 = vmatprep.subr.mxu0 0.0
        %1655 = vmatpush2.msra.mxu0 0.0
        %1656 = vmatprep.subr.mxu0 0.0
        %1657 = vmatpush2.msra.mxu0 0.0
        %1658 = vmatprep.subr.mxu0 0.0
        %1659 = vmatpush2.msra.mxu0 0.0
        %1660 = vmatprep.subr.mxu0 0.0
        %1661 = vmatpush2.msra.mxu0 0.0
        %1662 = vmatprep.subr.mxu0 0.0
        %1663 = vmatpush2.msra.mxu0 0.0
        %1664 = vmatprep.mubr.f32.mxu0 0.0
        %1665 = vmatmul.mubr.f32.gmra.mxu0 %v1595
        %v1666 = vpop.f32.mrf.mxu0
        %v1667 = vadd.f32 %v1592, %v1666
        %v1668 = vpop.f32.mrf.mxu0
        %1669 = vmatprep.mubr.f32.mxu0 0.0
        %1670 = vmatmul.mubr.f32.gmra.mxu0 %v1598
        %v1671 = vpop.f32.mrf.mxu0
        %v1672 = vadd.f32 %v1592, %v1671
        %v1673 = vpop.f32.mrf.mxu0
        %1674 = vdwg.mxu0
        %1675 = vst.msk [vmem:[%s437] sm:$0xff] %vm456, %v1667
        %1676 = vst.msk [vmem:[%s437 + $0x8] sm:$0xff] %vm456, %v1672
        %s1677 = sand.u32 %s231, 1
        %s1678 = scalar_lea.sflag [#allocation5], %s1677
        %s1679 = sand.u32 %s231, 1
        %s1680 = smul.addr %s1679, 16
        %s1681 = scalar_lea.vmem [#allocation15], %s1680
        // Predicated region
        $region85: #{tpu_custom_call.1} parent=55 // pred_check
          %p1682 = pneg %p241
        $region86: #{tpu_custom_call.1} parent=55 // pred_check_branch
          %1684 = sbr.rel (%p1682) target = $region88
        $region87: #{tpu_custom_call.1} parent=55 // pred_region
          %s1686 = ssub.s32 256, 256
          %1687 = vsyncadd %s1678, %s1686
          %s1688 = smul.addr %s29, 2
          %s1689 = smul.addr %s1688, 128
          %s1690 = scalar_lea.hbm %s9, %s1689
          %s1691 = sshll.u32 %s1681, 4
          %s1692 = int_to_ptr.vmem [resolvable:$true] %s1691
          %1697 = dma.vmem_to_hbm [thread:$0]  %s1692, 256, %s1690, %s1678, 128, 128, 8
        $region88: #{tpu_custom_call.1} parent=55 // pred_fallthru
          _
      $region56: #{tpu_custom_call.1} parent=5 // pred_fallthru
        _
      %p1698 = scmp.le.s32.totalorder 2, %s24
      // Predicated region
      $region89: #{tpu_custom_call.1} parent=5 // pred_check
        %p1699 = pneg %p1698
      $region90: #{tpu_custom_call.1} parent=5 // pred_check_branch
        %1701 = sbr.rel (%p1699) target = $region92
      $region91: #{tpu_custom_call.1} parent=5 // pred_region
        %s1702 = ssub.s32 %s24, 2
        // Predicated region
        $region93: #{tpu_custom_call.1} parent=91 // pred_check
          %p1703 = pneg %p247
        $region94: #{tpu_custom_call.1} parent=91 // pred_check_branch
          %1705 = sbr.rel (%p1703) target = $region96
        $region95: #{tpu_custom_call.1} parent=91 // pred_region
          %s1706 = sand.u32 %s232, 1
          %s1707 = scalar_lea.sflag [#allocation5], %s1706
          %s1708 = sand.u32 %s232, 1
          %s1709 = smul.addr %s1708, 16
          %s1710 = scalar_lea.vmem [#allocation15], %s1709
          %1711 = dma.done %s1707, 256
        $region96: #{tpu_custom_call.1} parent=91 // pred_fallthru
          _
      $region92: #{tpu_custom_call.1} parent=5 // pred_fallthru
        _
    $region6: #{tpu_custom_call.1} parent=1 // loop_footer
      %s28 = sadd.s32 1, %s24
    $region7: #{tpu_custom_call.1} parent=1 // loop_footer_branch
      %23 = sbr.rel target = $region3
    $region8: #{tpu_custom_call.1} parent=1 // loop_exit
      _
    %1712 = vsyncpa [#allocation4], 1
    %s1713 = scalar_lea.sflag [#allocation4], 1
    %1714 = vsyncpa %s1713, 1
    %1715 = vsyncpa [#allocation7], 1
    %1716 = vsyncpa [#allocation10], 1
    %1717 = vsyncpa [#allocation13], 1
    %1718 = vsyncpa [#allocation5], 1
    %s1719 = scalar_lea.sflag [#allocation5], 1
    %1720 = vsyncpa %s1719, 1

</llo_original>
